<compile_context>
chip_gen: v7x
topology: tpu7x:2x2x1
jax: 0.10.0
libtpu: 0.0.40
codegen_flags: <defaults>
</compile_context>

<pallas_src>
import functools

import jax
import jax.numpy as jnp
from jax.experimental import pallas as pl
from jax.experimental.pallas import tpu as pltpu


def _round_up(x, m):
    return ((x + m - 1) // m) * m


def _make_kernel(tap_offsets, cin_p, m_tile, halo):
    """Kernel closed over static tap offsets and tile sizes (all slices static)."""

    def kernel(xm_ref, xh_ref, w_ref, scale_ref, bias_ref, o_ref, win_ref, rhs_ref):
        # xm_ref:    (Cin_p, m_tile)        bf16  main input window for this M tile
        # xh_ref:    (Cin_p, halo)          bf16  halo (next (kh-1) rows + kw-1 cols)
        # w_ref:     (Cout_p, n_taps*Cin_p) bf16  tap-fused weight matrix
        # scale_ref: (Cout_p, 1) f32, bias_ref: (Cout_p, 1) f32  folded BN affine
        # o_ref:     (Cout_p, m_tile)       f32   lane-dense output tile
        # win_ref:   (Cin_p, m_tile+halo)   bf16  contiguous window scratch
        # rhs_ref:   (n_taps*Cin_p, m_tile) bf16  stacked shifted windows

        # Assemble the contiguous input window (main block + halo), both lane-aligned.
        win_ref[:, :m_tile] = xm_ref[...]
        win_ref[:, m_tile:] = xh_ref[...]

        # Stack the kh*kw shifted windows -> ONE GEMM with K = kh*kw*Cin_p.
        for t, off in enumerate(tap_offsets):            # static unroll
            rhs_ref[t * cin_p:(t + 1) * cin_p, :] = win_ref[:, off:off + m_tile]

        acc = jnp.dot(w_ref[...], rhs_ref[...], preferred_element_type=jnp.float32)

        # Folded BatchNorm affine (per output channel), kept in f32 (v5e has no bf16 VPU).
        y = acc * scale_ref[...] + bias_ref[...]

        # Mish with a single EUP exp: tanh(softplus(y)) = e*(e+2) / (e*(e+2)+2).
        e = jnp.exp(jnp.minimum(y, 20.0))                # clamp avoids inf
        num = e * (e + 2.0)
        ratio = num * pl.reciprocal(num + 2.0, approx=True)
        ratio = jnp.where(y > 20.0, 1.0, ratio)          # tanh(softplus(y)) -> 1
        o_ref[...] = (y * ratio).astype(o_ref.dtype)

    return kernel


def basic_conv_forward(x, weight, gamma, beta, running_mean, running_var,
                       stride=1, eps=1e-5, m_tile_target=2048):
    """x: [N, Cin, H, W] (NCHW), weight: [Cout, Cin, KH, KW]. Returns NCHW f32."""
    n, cin, h, w = x.shape
    cout, _, kh, kw = weight.shape
    pad = kh // 2                       # matches nn.Conv2d(..., padding=kernel_size // 2)

    hp, wp = h + 2 * pad, w + 2 * pad
    ho = (h + 2 * pad - kh) // stride + 1
    wo = (w + 2 * pad - kw) // stride + 1
    ho1 = hp - kh + 1                   # stride-1 output rows
    m_img = ho1 * wp                    # flattened per-image output length (incl. wrap cols)

    cin_p = _round_up(cin, 16)          # bf16 sublane packing (16 rows / vreg)
    cout_p = _round_up(cout, 8)
    k_tot = kh * kw * cin_p             # fused contraction length

    max_off = (kh - 1) * wp + (kw - 1)  # largest tap offset (the halo)
    halo = max(128, _round_up(max_off, 128))
    # m_tile: multiple of `halo` (hence of 128) -> lane-aligned main & halo blocks.
    m_tile = min(_round_up(m_img, halo), _round_up(m_tile_target, halo))
    m_pad = _round_up(m_img, m_tile)
    num_m = m_pad // m_tile
    mt_blocks = m_tile // halo          # halo-sized blocks per M tile

    l_needed = m_pad + halo             # last tile reads up to m_pad + halo
    extra_rows = max(0, -(-(l_needed - hp * wp) // wp))
    l_flat = (hp + extra_rows) * wp

    # Single HBM pass over the input: bf16 cast, then ONE pad merging channel pad,
    # spatial halo pad and the flat tail rows; flatten spatial (channel-major).
    xp = jnp.pad(x.astype(jnp.bfloat16),
                 ((0, 0), (0, cin_p - cin), (pad, pad + extra_rows), (pad, pad)))
    x_flat = xp.reshape(n, cin_p, l_flat)

    # Tap-fused weight matrix: column t*Cin_p + c  <->  weight[o, c, i, j], t = i*kw + j.
    w_mat = jnp.pad(weight.transpose(0, 2, 3, 1),
                    ((0, cout_p - cout), (0, 0), (0, 0), (0, cin_p - cin)))
    w_mat = w_mat.reshape(cout_p, k_tot).astype(jnp.bfloat16)

    # Fold BatchNorm (inference) into a per-channel affine, f32.
    scale = gamma / jnp.sqrt(running_var + eps)
    bias = beta - running_mean * scale
    scale_p = jnp.pad(scale, (0, cout_p - cout)).reshape(cout_p, 1).astype(jnp.float32)
    bias_p = jnp.pad(bias, (0, cout_p - cout)).reshape(cout_p, 1).astype(jnp.float32)

    tap_offsets = tuple(i * wp + j for i in range(kh) for j in range(kw))
    kernel = _make_kernel(tap_offsets, cin_p, m_tile, halo)

    out = pl.pallas_call(
        kernel,
        out_shape=jax.ShapeDtypeStruct((n, cout_p, m_pad), jnp.float32),
        grid_spec=pltpu.PrefetchScalarGridSpec(
            num_scalar_prefetch=0,
            grid=(n, num_m),
            in_specs=[
                # main window for this M tile
                pl.BlockSpec((None, cin_p, m_tile), lambda b, m: (b, 0, m)),
                # halo window right after the main block (lane-aligned)
                pl.BlockSpec((None, cin_p, halo),
                             lambda b, m: (b, 0, (m + 1) * mt_blocks)),
                pl.BlockSpec((cout_p, k_tot), lambda b, m: (0, 0)),
                pl.BlockSpec((cout_p, 1), lambda b, m: (0, 0)),
                pl.BlockSpec((cout_p, 1), lambda b, m: (0, 0)),
            ],
            out_specs=pl.BlockSpec((None, cout_p, m_tile), lambda b, m: (b, 0, m)),
            scratch_shapes=[
                pltpu.VMEM((cin_p, m_tile + halo), jnp.bfloat16),     # window
                pltpu.VMEM((k_tot, m_tile), jnp.bfloat16),            # stacked RHS
            ],
        ),
        compiler_params=pltpu.CompilerParams(
            dimension_semantics=("parallel", "parallel"),
            vmem_limit_bytes=48 * 1024 * 1024),
    )(x_flat, x_flat, w_mat, scale_p, bias_p)

    # (N, Cout_p, m_pad) -> drop channel / lane padding, un-flatten, apply stride.
    y = out[:, :cout, :m_img].reshape(n, cout, ho1, wp)
    h_stop = (ho - 1) * stride + 1
    w_stop = (wo - 1) * stride + 1
    return y[:, :, :h_stop:stride, :w_stop:stride]


def _reference(x, weight, gamma, beta, running_mean, running_var,
               stride=1, eps=1e-5):
    pad = weight.shape[2] // 2
    y = jax.lax.conv_general_dilated(
        x, weight, window_strides=(stride, stride),
        padding=[(pad, pad), (pad, pad)],
        dimension_numbers=("NCHW", "OIHW", "NCHW"),
        precision=jax.lax.Precision.HIGHEST)
    scale = (gamma / jnp.sqrt(running_var + eps)).reshape(1, -1, 1, 1)
    bias = (beta - running_mean * gamma / jnp.sqrt(running_var + eps)).reshape(1, -1, 1, 1)
    y = y * scale + bias
    return y * jnp.tanh(jax.nn.softplus(y))


if __name__ == "__main__":
    # Small, deterministic example: BasicConv(in_channels=4, out_channels=8, kernel_size=3)
    N, Cin, H, W = 2, 4, 16, 16
    Cout, K = 8, 3

    key = jax.random.PRNGKey(0)
    k_x, k_w, k_g, k_b, k_m, k_v = jax.random.split(key, 6)

    x = jax.random.normal(k_x, (N, Cin, H, W), dtype=jnp.float32)
    fan_in = Cin * K * K
    weight = jax.random.normal(k_w, (Cout, Cin, K, K), dtype=jnp.float32) / jnp.sqrt(fan_in)
    gamma = 1.0 + 0.1 * jax.random.normal(k_g, (Cout,), dtype=jnp.float32)
    beta = 0.1 * jax.random.normal(k_b, (Cout,), dtype=jnp.float32)
    running_mean = 0.1 * jax.random.normal(k_m, (Cout,), dtype=jnp.float32)
    running_var = 1.0 + 0.1 * jnp.abs(jax.random.normal(k_v, (Cout,), dtype=jnp.float32))

    fwd = jax.jit(functools.partial(basic_conv_forward, stride=1))
    out = jax.block_until_ready(fwd(x, weight, gamma, beta, running_mean, running_var))

    # Reference: inputs rounded to bf16 (the kernel feeds the MXU bf16 operands with
    # f32 accumulation), then an exact f32 conv + BN + Mish.
    x_r = x.astype(jnp.bfloat16).astype(jnp.float32)
    w_r = weight.astype(jnp.bfloat16).astype(jnp.float32)
    ref = _reference(x_r, w_r, gamma, beta, running_mean, running_var, stride=1)

    assert out.shape == (N, Cout, H, W), out.shape
    max_err = float(jnp.max(jnp.abs(out - ref)))
    assert jnp.allclose(out, ref, atol=2e-2, rtol=2e-2), max_err

    print("KERNEL_OK")
</pallas_src>

<mosaic_0001>
module attributes {stable_mosaic.version = 11 : i64} {
  func.func @kernel(%arg0: i32, %arg1: i32, %arg2: memref<1x16x384xbf16, #tpu.memory_space<vmem>>, %arg3: memref<1x16x128xbf16, #tpu.memory_space<vmem>>, %arg4: memref<8x144xbf16, #tpu.memory_space<vmem>>, %arg5: memref<8x1xf32, #tpu.memory_space<vmem>>, %arg6: memref<8x1xf32, #tpu.memory_space<vmem>>, %arg7: memref<1x8x384xf32, #tpu.memory_space<vmem>>, %arg8: memref<16x512xbf16, #tpu.memory_space<vmem>>, %arg9: memref<144x384xbf16, #tpu.memory_space<vmem>>) attributes {dimension_semantics = [#tpu.dimension_semantics<parallel>, #tpu.dimension_semantics<parallel>], iteration_bounds = array<i64: 2, 1>, scalar_prefetch = 0 : i64, scratch_operands = 2 : i64, tpu.core_type = #tpu.core_type<tc>, window_params = [{transform_indices = @transform_0, window_bounds = array<i64: 1, 16, 384>}, {transform_indices = @transform_1, window_bounds = array<i64: 1, 16, 128>}, {pipeline_mode = #tpu.pipeline_mode<synchronous>, transform_indices = @transform_2, window_bounds = array<i64: 8, 144>}, {pipeline_mode = #tpu.pipeline_mode<synchronous>, transform_indices = @transform_3, window_bounds = array<i64: 8, 1>}, {pipeline_mode = #tpu.pipeline_mode<synchronous>, transform_indices = @transform_4, window_bounds = array<i64: 8, 1>}, {transform_indices = @transform_5, window_bounds = array<i64: 1, 8, 384>}]} {
    %c0 = arith.constant 0 : index
    %c0_0 = arith.constant 0 : index
    %c0_1 = arith.constant 0 : index
    %0 = vector.load %arg2[%c0, %c0_0, %c0_1] : memref<1x16x384xbf16, #tpu.memory_space<vmem>>, vector<1x16x384xbf16>
    %1 = vector.shape_cast %0 : vector<1x16x384xbf16> to vector<16x384xbf16>
    %c0_2 = arith.constant 0 : index
    %c0_3 = arith.constant 0 : index
    %2 = vector.load %arg8[%c0_2, %c0_3] : memref<16x512xbf16, #tpu.memory_space<vmem>>, vector<16x384xbf16>
    tpu.vector_store %arg8[%c0_2, %c0_3], %1 {strides = array<i32>} : memref<16x512xbf16, #tpu.memory_space<vmem>>, vector<16x384xbf16>,
    %c0_4 = arith.constant 0 : index
    %c0_5 = arith.constant 0 : index
    %c0_6 = arith.constant 0 : index
    %3 = vector.load %arg3[%c0_4, %c0_5, %c0_6] : memref<1x16x128xbf16, #tpu.memory_space<vmem>>, vector<1x16x128xbf16>
    %4 = vector.shape_cast %3 : vector<1x16x128xbf16> to vector<16x128xbf16>
    %c0_7 = arith.constant 0 : index
    %c384 = arith.constant 384 : index
    %5 = vector.load %arg8[%c0_7, %c384] : memref<16x512xbf16, #tpu.memory_space<vmem>>, vector<16x128xbf16>
    tpu.vector_store %arg8[%c0_7, %c384], %4 {strides = array<i32>} : memref<16x512xbf16, #tpu.memory_space<vmem>>, vector<16x128xbf16>,
    %c0_8 = arith.constant 0 : index
    %c0_9 = arith.constant 0 : index
    %6 = vector.load %arg8[%c0_8, %c0_9] : memref<16x512xbf16, #tpu.memory_space<vmem>>, vector<16x384xbf16>
    %c0_10 = arith.constant 0 : index
    %c0_11 = arith.constant 0 : index
    %7 = vector.load %arg9[%c0_10, %c0_11] : memref<144x384xbf16, #tpu.memory_space<vmem>>, vector<16x384xbf16>
    tpu.vector_store %arg9[%c0_10, %c0_11], %6 {strides = array<i32>} : memref<144x384xbf16, #tpu.memory_space<vmem>>, vector<16x384xbf16>,
    %c0_12 = arith.constant 0 : index
    %c1 = arith.constant 1 : index
    %8 = vector.load %arg8[%c0_12, %c1] : memref<16x512xbf16, #tpu.memory_space<vmem>>, vector<16x384xbf16>
    %c16 = arith.constant 16 : index
    %c0_13 = arith.constant 0 : index
    %9 = vector.load %arg9[%c16, %c0_13] : memref<144x384xbf16, #tpu.memory_space<vmem>>, vector<16x384xbf16>
    tpu.vector_store %arg9[%c16, %c0_13], %8 {strides = array<i32>} : memref<144x384xbf16, #tpu.memory_space<vmem>>, vector<16x384xbf16>,
    %c0_14 = arith.constant 0 : index
    %c2 = arith.constant 2 : index
    %10 = vector.load %arg8[%c0_14, %c2] : memref<16x512xbf16, #tpu.memory_space<vmem>>, vector<16x384xbf16>
    %c32 = arith.constant 32 : index
    %c0_15 = arith.constant 0 : index
    %11 = vector.load %arg9[%c32, %c0_15] : memref<144x384xbf16, #tpu.memory_space<vmem>>, vector<16x384xbf16>
    tpu.vector_store %arg9[%c32, %c0_15], %10 {strides = array<i32>} : memref<144x384xbf16, #tpu.memory_space<vmem>>, vector<16x384xbf16>,
    %c0_16 = arith.constant 0 : index
    %c18 = arith.constant 18 : index
    %12 = vector.load %arg8[%c0_16, %c18] : memref<16x512xbf16, #tpu.memory_space<vmem>>, vector<16x384xbf16>
    %c48 = arith.constant 48 : index
    %c0_17 = arith.constant 0 : index
    %13 = vector.load %arg9[%c48, %c0_17] : memref<144x384xbf16, #tpu.memory_space<vmem>>, vector<16x384xbf16>
    tpu.vector_store %arg9[%c48, %c0_17], %12 {strides = array<i32>} : memref<144x384xbf16, #tpu.memory_space<vmem>>, vector<16x384xbf16>,
    %c0_18 = arith.constant 0 : index
    %c19 = arith.constant 19 : index
    %14 = vector.load %arg8[%c0_18, %c19] : memref<16x512xbf16, #tpu.memory_space<vmem>>, vector<16x384xbf16>
    %c64 = arith.constant 64 : index
    %c0_19 = arith.constant 0 : index
    %15 = vector.load %arg9[%c64, %c0_19] : memref<144x384xbf16, #tpu.memory_space<vmem>>, vector<16x384xbf16>
    tpu.vector_store %arg9[%c64, %c0_19], %14 {strides = array<i32>} : memref<144x384xbf16, #tpu.memory_space<vmem>>, vector<16x384xbf16>,
    %c0_20 = arith.constant 0 : index
    %c20 = arith.constant 20 : index
    %16 = vector.load %arg8[%c0_20, %c20] : memref<16x512xbf16, #tpu.memory_space<vmem>>, vector<16x384xbf16>
    %c80 = arith.constant 80 : index
    %c0_21 = arith.constant 0 : index
    %17 = vector.load %arg9[%c80, %c0_21] : memref<144x384xbf16, #tpu.memory_space<vmem>>, vector<16x384xbf16>
    tpu.vector_store %arg9[%c80, %c0_21], %16 {strides = array<i32>} : memref<144x384xbf16, #tpu.memory_space<vmem>>, vector<16x384xbf16>,
    %c0_22 = arith.constant 0 : index
    %c36 = arith.constant 36 : index
    %18 = vector.load %arg8[%c0_22, %c36] : memref<16x512xbf16, #tpu.memory_space<vmem>>, vector<16x384xbf16>
    %c96 = arith.constant 96 : index
    %c0_23 = arith.constant 0 : index
    %19 = vector.load %arg9[%c96, %c0_23] : memref<144x384xbf16, #tpu.memory_space<vmem>>, vector<16x384xbf16>
    tpu.vector_store %arg9[%c96, %c0_23], %18 {strides = array<i32>} : memref<144x384xbf16, #tpu.memory_space<vmem>>, vector<16x384xbf16>,
    %c0_24 = arith.constant 0 : index
    %c37 = arith.constant 37 : index
    %20 = vector.load %arg8[%c0_24, %c37] : memref<16x512xbf16, #tpu.memory_space<vmem>>, vector<16x384xbf16>
    %c112 = arith.constant 112 : index
    %c0_25 = arith.constant 0 : index
    %21 = vector.load %arg9[%c112, %c0_25] : memref<144x384xbf16, #tpu.memory_space<vmem>>, vector<16x384xbf16>
    tpu.vector_store %arg9[%c112, %c0_25], %20 {strides = array<i32>} : memref<144x384xbf16, #tpu.memory_space<vmem>>, vector<16x384xbf16>,
    %c0_26 = arith.constant 0 : index
    %c38 = arith.constant 38 : index
    %22 = vector.load %arg8[%c0_26, %c38] : memref<16x512xbf16, #tpu.memory_space<vmem>>, vector<16x384xbf16>
    %c128 = arith.constant 128 : index
    %c0_27 = arith.constant 0 : index
    %23 = vector.load %arg9[%c128, %c0_27] : memref<144x384xbf16, #tpu.memory_space<vmem>>, vector<16x384xbf16>
    tpu.vector_store %arg9[%c128, %c0_27], %22 {strides = array<i32>} : memref<144x384xbf16, #tpu.memory_space<vmem>>, vector<16x384xbf16>,
    %c0_28 = arith.constant 0 : index
    %c0_29 = arith.constant 0 : index
    %24 = vector.load %arg4[%c0_28, %c0_29] : memref<8x144xbf16, #tpu.memory_space<vmem>>, vector<8x144xbf16>
    %c0_30 = arith.constant 0 : index
    %c0_31 = arith.constant 0 : index
    %25 = vector.load %arg9[%c0_30, %c0_31] : memref<144x384xbf16, #tpu.memory_space<vmem>>, vector<144x384xbf16>
    %cst = arith.constant dense<0.000000e+00> : vector<8x384xf32>
    %26 = tpu.matmul %24, %25, %cst {dimension_numbers = #tpu.dot_dimension_numbers<[1], [0], [0], [1], [0, 0, 1, 1], [], []>} : vector<8x144xbf16>, vector<144x384xbf16>, vector<8x384xf32> -> vector<8x384xf32>
    %c0_32 = arith.constant 0 : index
    %c0_33 = arith.constant 0 : index
    %27 = vector.load %arg5[%c0_32, %c0_33] : memref<8x1xf32, #tpu.memory_space<vmem>>, vector<8x1xf32>
    %28 = vector.broadcast %27 : vector<8x1xf32> to vector<8x384xf32>
    %29 = arith.mulf %26, %28 : vector<8x384xf32>
    %c0_34 = arith.constant 0 : index
    %c0_35 = arith.constant 0 : index
    %30 = vector.load %arg6[%c0_34, %c0_35] : memref<8x1xf32, #tpu.memory_space<vmem>>, vector<8x1xf32>
    %31 = vector.broadcast %30 : vector<8x1xf32> to vector<8x384xf32>
    %32 = arith.addf %29, %31 : vector<8x384xf32>
    %cst_36 = arith.constant 2.000000e+01 : f32
    %33 = vector.broadcast %cst_36 : f32 to vector<8x384xf32>
    %34 = arith.minimumf %32, %33 : vector<8x384xf32>
    %35 = math.exp %34 : vector<8x384xf32>
    %cst_37 = arith.constant 2.000000e+00 : f32
    %36 = vector.broadcast %cst_37 : f32 to vector<8x384xf32>
    %37 = arith.addf %35, %36 : vector<8x384xf32>
    %38 = arith.mulf %35, %37 : vector<8x384xf32>
    %cst_38 = arith.constant 2.000000e+00 : f32
    %39 = vector.broadcast %cst_38 : f32 to vector<8x384xf32>
    %40 = arith.addf %38, %39 : vector<8x384xf32>
    %41 = tpu.reciprocal %40 {approx = true} : vector<8x384xf32> -> vector<8x384xf32>
    %42 = arith.mulf %38, %41 : vector<8x384xf32>
    %cst_39 = arith.constant 2.000000e+01 : f32
    %43 = vector.broadcast %cst_39 : f32 to vector<8x384xf32>
    %44 = arith.cmpf ogt, %32, %43 : vector<8x384xf32>
    %cst_40 = arith.constant 1.000000e+00 : f32
    %45 = vector.broadcast %cst_40 : f32 to vector<8x384xf32>
    %46 = arith.select %44, %45, %42 : vector<8x384xi1>, vector<8x384xf32>
    %47 = arith.mulf %32, %46 : vector<8x384xf32>
    %c0_41 = arith.constant 0 : index
    %c0_42 = arith.constant 0 : index
    %c0_43 = arith.constant 0 : index
    %48 = vector.load %arg7[%c0_41, %c0_42, %c0_43] : memref<1x8x384xf32, #tpu.memory_space<vmem>>, vector<1x8x384xf32>
    %49 = vector.shape_cast %48 : vector<1x8x384xf32> to vector<8x384xf32>
    %50 = vector.shape_cast %47 : vector<8x384xf32> to vector<1x8x384xf32>
    tpu.vector_store %arg7[%c0_41, %c0_42, %c0_43], %50 {strides = array<i32>} : memref<1x8x384xf32, #tpu.memory_space<vmem>>, vector<1x8x384xf32>,
    return
  }
  func.func @transform_0(%arg0: i32, %arg1: i32) -> (i32, i32, i32) {
    %c0_i32 = arith.constant 0 : i32
    %c0_i32_0 = arith.constant 0 : i32
    return %arg0, %c0_i32, %arg1 : i32, i32, i32
  }
  func.func @transform_1(%arg0: i32, %arg1: i32) -> (i32, i32, i32) {
    %c1_i32 = arith.constant 1 : i32
    %0 = arith.addi %arg1, %c1_i32 : i32
    %c3_i32 = arith.constant 3 : i32
    %1 = arith.muli %0, %c3_i32 : i32
    %c0_i32 = arith.constant 0 : i32
    %c0_i32_0 = arith.constant 0 : i32
    return %arg0, %c0_i32, %1 : i32, i32, i32
  }
  func.func @transform_2(%arg0: i32, %arg1: i32) -> (i32, i32) {
    %c0_i32 = arith.constant 0 : i32
    %c0_i32_0 = arith.constant 0 : i32
    %c0_i32_1 = arith.constant 0 : i32
    return %c0_i32, %c0_i32_0 : i32, i32
  }
  func.func @transform_3(%arg0: i32, %arg1: i32) -> (i32, i32) {
    %c0_i32 = arith.constant 0 : i32
    %c0_i32_0 = arith.constant 0 : i32
    %c0_i32_1 = arith.constant 0 : i32
    return %c0_i32, %c0_i32_0 : i32, i32
  }
  func.func @transform_4(%arg0: i32, %arg1: i32) -> (i32, i32) {
    %c0_i32 = arith.constant 0 : i32
    %c0_i32_0 = arith.constant 0 : i32
    %c0_i32_1 = arith.constant 0 : i32
    return %c0_i32, %c0_i32_0 : i32, i32
  }
  func.func @transform_5(%arg0: i32, %arg1: i32) -> (i32, i32, i32) {
    %c0_i32 = arith.constant 0 : i32
    %c0_i32_0 = arith.constant 0 : i32
    return %arg0, %c0_i32, %arg1 : i32, i32, i32
  }
}

</mosaic_0001>

<llo_original>
// kernel: basic_conv_forward.1
$region0: #{basic_conv_forward.1}
  #allocation0 [shape = 'u32[]', space=smem, size = 0x4, offset = 0x4, fixed_abs, tag = 'smem constant byte address 0x4 - core index']
  #allocation1 [shape = 'u32[144,128]{1,0:T(1,128)}', space=vmem, size = 0x12000, scoped, tag = 'internal scratch']
  #allocation2 [shape = 'bf16[16,512]{1,0:T(16,128)(2,1)}', space=vmem, size = 0x4000, scoped, tag = 'scratch operand']
  #allocation3 [shape = 'bf16[144,384]{1,0:T(16,128)(2,1)}', space=vmem, size = 0x1b000, scoped, tag = 'scratch operand']
  %s0 = inlined_call_operand.vmem [shape: bf16[2,16,522], index: 0, kind: input, shape index: {}, may-alias: {0,1}]
  %s1 = inlined_call_operand.vmem [shape: bf16[2,16,522], index: 1, kind: input, shape index: {}, may-alias: {0,1}]
  %s2 = inlined_call_operand.vmem [shape: bf16[8,144], index: 2, kind: input, shape index: {}]
  %s3 = inlined_call_operand.vmem [shape: f32[8,1], index: 3, kind: input, shape index: {}]
  %s4 = inlined_call_operand.vmem [shape: f32[8,1], index: 4, kind: input, shape index: {}]
  %s5 = inlined_call_operand.vmem [shape: f32[2,8,384], index: 5, kind: output, shape index: {}]
  %s6 = sld [smem:[#allocation0]]
  $region160: #{basic_conv_forward.1} parent=0
    _
  %s8 = ssub.s32 1, %s6
  %s9 = scalar_select 0, %s8, %s6
  $region1: #{basic_conv_forward.1} parent=0
    #allocation4 [shape = 'u8[24576]{0}', space=vmem, size = 0x6000, scoped, tag = 'input window, operand 0']
    #allocation5 [shape = 'u8[8192]{0}', space=vmem, size = 0x2000, scoped, tag = 'input window, operand 1']
    loop: start=0, step=1, limit=4
    $region2: #{basic_conv_forward.1} parent=1 // loop_pre_header
      _
    $region3: #{basic_conv_forward.1} parent=1 // loop_header
      %s11 = sphi 0, %s15
      %p12 = scmp.ge.s32.totalorder %s11, 4
      %s18 = sphi 0, %s30
      %s19 = sphi 0, %s26
      %s20 = sphi 0, %s18
      %s21 = sphi 0, %s19
      %s22 = sphi 0, %s20
      %s23 = sphi 0, %s21
      %s35 = sphi 0, %s37
      %s38 = sphi 0, %s35
      %s39 = sphi 0, %s38
      %s55 = sphi 0, %s39
      %s67 = sphi 0, %s69
      %s70 = sphi 0, %s67
      %s71 = sphi 0, %s70
      %s87 = sphi 0, %s71
      %s91 = sphi 0, %s91
      %s93 = sphi 0, %s91
      %s94 = sphi 0, %s93
      %s108 = sphi 0, %s94
      %s112 = sphi 0, %s112
      %s114 = sphi 0, %s112
      %s115 = sphi 0, %s114
      %s129 = sphi 0, %s115
      %s133 = sphi 0, %s133
      %s135 = sphi 0, %s133
      %s136 = sphi 0, %s135
      %s150 = sphi 0, %s136
      %s158 = sphi 0, %s160
      %s161 = sphi 0, %s158
      %s162 = sphi 0, %s161
      %s178 = sphi 0, %s162
    $region4: #{basic_conv_forward.1} parent=1 // loop_header_branch
      %14 = sbr.rel (%p12) target = $region8
    $region5: #{basic_conv_forward.1} parent=1 // loop_body
      %s16 = ssub.s32 %s11, 1
      %s17 = ssub.s32 %s11, 2
      %s24 = sadd.s32 1, %s19
      %p25 = scmp.ge.s32.totalorder %s24, 1
      %s26 = scalar_select %p25, 0, %s24
      %s27 = sadd.s32 1, %s18
      %s28 = scalar_select %p25, %s27, %s18
      %p29 = scmp.ge.s32.totalorder %s28, 2
      %s30 = scalar_select %p29, 0, %s28
      %s31 = ssub.s32 %s18, %s30
      %s32 = ssub.s32 %s19, %s26
      %s33 = sor.u32 %s31, %s32
      %p34 = scmp.eq.s32.totalorder %s33, 0
      %s36 = sadd.s32 %s35, 1
      %s37 = scalar_select %p34, %s35, %s36
      %p40 = pneg %p34
      %p41 = scmp.eq.s32.totalorder %s11, 1
      %p42 = por %p40, %p41
      %p43 = scmp.ne.s32.totalorder %s35, %s38
      %p44 = scmp.eq.s32.totalorder %s11, 0
      %p45 = por %p43, %p44
      %p46 = scmp.ne.s32.totalorder %s35, %s38
      %p47 = scmp.eq.s32.totalorder %s16, 1
      %p48 = por %p46, %p47
      %p49 = scmp.ne.s32.totalorder %s38, %s39
      %p50 = scmp.eq.s32.totalorder %s16, 0
      %p51 = por %p49, %p50
      %p52 = scmp.ne.s32.totalorder %s38, %s39
      %p53 = scmp.eq.s32.totalorder %s17, 1
      %p54 = por %p52, %p53
      %p56 = scmp.ne.s32.totalorder %s39, %s55
      %p57 = scmp.eq.s32.totalorder %s17, 0
      %p58 = por %p56, %p57
      %s59 = sadd.s32 %s19, 1
      %s60 = smul.u32 %s59, 3
      %s61 = sadd.s32 %s26, 1
      %s62 = smul.u32 %s61, 3
      %s63 = ssub.s32 %s18, %s30
      %s64 = ssub.s32 %s60, %s62
      %s65 = sor.u32 %s63, %s64
      %p66 = scmp.eq.s32.totalorder %s65, 0
      %s68 = sadd.s32 %s67, 1
      %s69 = scalar_select %p66, %s67, %s68
      %p72 = pneg %p66
      %p73 = scmp.eq.s32.totalorder %s11, 1
      %p74 = por %p72, %p73
      %p75 = scmp.ne.s32.totalorder %s67, %s70
      %p76 = scmp.eq.s32.totalorder %s11, 0
      %p77 = por %p75, %p76
      %p78 = scmp.ne.s32.totalorder %s67, %s70
      %p79 = scmp.eq.s32.totalorder %s16, 1
      %p80 = por %p78, %p79
      %p81 = scmp.ne.s32.totalorder %s70, %s71
      %p82 = scmp.eq.s32.totalorder %s16, 0
      %p83 = por %p81, %p82
      %p84 = scmp.ne.s32.totalorder %s70, %s71
      %p85 = scmp.eq.s32.totalorder %s17, 1
      %p86 = por %p84, %p85
      %p88 = scmp.ne.s32.totalorder %s71, %s87
      %p89 = scmp.eq.s32.totalorder %s17, 0
      %p90 = por %p88, %p89
      %s92 = sadd.s32 %s91, 1
      %p95 = scmp.eq.s32.totalorder %s11, 1
      %p96 = scmp.ne.s32.totalorder %s91, %s93
      %p97 = scmp.eq.s32.totalorder %s11, 0
      %p98 = por %p96, %p97
      %p99 = scmp.ne.s32.totalorder %s91, %s93
      %p100 = scmp.eq.s32.totalorder %s16, 1
      %p101 = por %p99, %p100
      %p102 = scmp.ne.s32.totalorder %s93, %s94
      %p103 = scmp.eq.s32.totalorder %s16, 0
      %p104 = por %p102, %p103
      %p105 = scmp.ne.s32.totalorder %s93, %s94
      %p106 = scmp.eq.s32.totalorder %s17, 1
      %p107 = por %p105, %p106
      %p109 = scmp.ne.s32.totalorder %s94, %s108
      %p110 = scmp.eq.s32.totalorder %s17, 0
      %p111 = por %p109, %p110
      %s113 = sadd.s32 %s112, 1
      %p116 = scmp.eq.s32.totalorder %s11, 1
      %p117 = scmp.ne.s32.totalorder %s112, %s114
      %p118 = scmp.eq.s32.totalorder %s11, 0
      %p119 = por %p117, %p118
      %p120 = scmp.ne.s32.totalorder %s112, %s114
      %p121 = scmp.eq.s32.totalorder %s16, 1
      %p122 = por %p120, %p121
      %p123 = scmp.ne.s32.totalorder %s114, %s115
      %p124 = scmp.eq.s32.totalorder %s16, 0
      %p125 = por %p123, %p124
      %p126 = scmp.ne.s32.totalorder %s114, %s115
      %p127 = scmp.eq.s32.totalorder %s17, 1
      %p128 = por %p126, %p127
      %p130 = scmp.ne.s32.totalorder %s115, %s129
      %p131 = scmp.eq.s32.totalorder %s17, 0
      %p132 = por %p130, %p131
      %s134 = sadd.s32 %s133, 1
      %p137 = scmp.eq.s32.totalorder %s11, 1
      %p138 = scmp.ne.s32.totalorder %s133, %s135
      %p139 = scmp.eq.s32.totalorder %s11, 0
      %p140 = por %p138, %p139
      %p141 = scmp.ne.s32.totalorder %s133, %s135
      %p142 = scmp.eq.s32.totalorder %s16, 1
      %p143 = por %p141, %p142
      %p144 = scmp.ne.s32.totalorder %s135, %s136
      %p145 = scmp.eq.s32.totalorder %s16, 0
      %p146 = por %p144, %p145
      %p147 = scmp.ne.s32.totalorder %s135, %s136
      %p148 = scmp.eq.s32.totalorder %s17, 1
      %p149 = por %p147, %p148
      %p151 = scmp.ne.s32.totalorder %s136, %s150
      %p152 = scmp.eq.s32.totalorder %s17, 0
      %p153 = por %p151, %p152
      %s154 = ssub.s32 %s18, %s30
      %s155 = ssub.s32 %s19, %s26
      %s156 = sor.u32 %s154, %s155
      %p157 = scmp.eq.s32.totalorder %s156, 0
      %s159 = sadd.s32 %s158, 1
      %s160 = scalar_select %p157, %s158, %s159
      %p163 = pneg %p157
      %p164 = scmp.eq.s32.totalorder %s11, 1
      %p165 = por %p163, %p164
      %p166 = scmp.ne.s32.totalorder %s158, %s161
      %p167 = scmp.eq.s32.totalorder %s11, 0
      %p168 = por %p166, %p167
      %p169 = scmp.ne.s32.totalorder %s158, %s161
      %p170 = scmp.eq.s32.totalorder %s16, 1
      %p171 = por %p169, %p170
      %p172 = scmp.ne.s32.totalorder %s161, %s162
      %p173 = scmp.eq.s32.totalorder %s16, 0
      %p174 = por %p172, %p173
      %p175 = scmp.ne.s32.totalorder %s161, %s162
      %p176 = scmp.eq.s32.totalorder %s17, 1
      %p177 = por %p175, %p176
      %p179 = scmp.ne.s32.totalorder %s162, %s178
      %p180 = scmp.eq.s32.totalorder %s17, 0
      %p181 = por %p179, %p180
      %p182 = scmp.le.s32.totalorder 1, %s11
      %p183 = scmp.lt.s32.totalorder %s11, 3
      %p184 = pnand %p182, %p183
      %p185 = pneg %p184
      // Predicated region
      $region9: #{basic_conv_forward.1} parent=5 // pred_check
        _
      $region10: #{basic_conv_forward.1} parent=5 // pred_check_branch
        %187 = sbr.rel (%p184) target = $region12
      $region11: #{basic_conv_forward.1} parent=5 // pred_region
        %s188 = ssub.s32 %s11, 1
        // Predicated region
        $region13: #{basic_conv_forward.1} parent=11 // pred_check
          %p189 = pneg %p104
        $region14: #{basic_conv_forward.1} parent=11 // pred_check_branch
          %191 = sbr.rel (%p189) target = $region16
        $region15: #{basic_conv_forward.1} parent=11 // pred_region
          _
        $region16: #{basic_conv_forward.1} parent=11 // pred_fallthru
          _
        // Predicated region
        $region17: #{basic_conv_forward.1} parent=11 // pred_check
          %p192 = pneg %p125
        $region18: #{basic_conv_forward.1} parent=11 // pred_check_branch
          %194 = sbr.rel (%p192) target = $region20
        $region19: #{basic_conv_forward.1} parent=11 // pred_region
          _
        $region20: #{basic_conv_forward.1} parent=11 // pred_fallthru
          _
        // Predicated region
        $region21: #{basic_conv_forward.1} parent=11 // pred_check
          %p195 = pneg %p146
        $region22: #{basic_conv_forward.1} parent=11 // pred_check_branch
          %197 = sbr.rel (%p195) target = $region24
        $region23: #{basic_conv_forward.1} parent=11 // pred_region
          _
        $region24: #{basic_conv_forward.1} parent=11 // pred_fallthru
          _
      $region12: #{basic_conv_forward.1} parent=5 // pred_fallthru
        _
      %p198 = scmp.lt.s32.totalorder %s11, 2
      // Predicated region
      $region25: #{basic_conv_forward.1} parent=5 // pred_check
        %p199 = pneg %p198
      $region26: #{basic_conv_forward.1} parent=5 // pred_check_branch
        %201 = sbr.rel (%p199) target = $region28
      $region27: #{basic_conv_forward.1} parent=5 // pred_region
        // Predicated region
        $region29: #{basic_conv_forward.1} parent=27 // pred_check
          %p202 = pneg %p45
        $region30: #{basic_conv_forward.1} parent=27 // pred_check_branch
          %204 = sbr.rel (%p202) target = $region32
        $region31: #{basic_conv_forward.1} parent=27 // pred_region
          %s205 = sand.u32 %s35, 1
          %s206 = sand.u32 %s35, 1
          %s207 = smul.addr %s206, 24
          %s208 = scalar_lea.vmem [#allocation4], %s207
          %s209 = smul.u32 3, %s19
          %s210 = ssub.s32 5, %s209
          %p211 = scmp.lt.s32.totalorder %s210, 3
          %s212 = scalar_select %p211, %s210, 3
          %s213 = smul.u32 128, %s212
          %p214 = scmp.ne.s32.totalorder 0, %s213
          %s215 = smul.addr %s18, 10
          %s216 = sadd.s32 %s209, %s215
          %s217 = smul.addr %s216, 4
          %s218 = scalar_lea.vmem %s0, %s217
          %s219 = smul.u32 %s212, 4
          // Predicated region
          $region33: #{basic_conv_forward.1} parent=31 // pred_check
            %p220 = pneg %p214
          $region34: #{basic_conv_forward.1} parent=31 // pred_check_branch
            %222 = sbr.rel (%p220) target = $region36
          $region35: #{basic_conv_forward.1} parent=31 // pred_region
            %p223 = scmp.lt.u32.totalorder %s219, 8
            %p224 = pneg %p223
            // Predicated region
            $region37: #{basic_conv_forward.1} parent=35 // pred_check
              _
            $region38: #{basic_conv_forward.1} parent=35 // pred_check_branch
              %226 = sbr.rel (%p223) target = $region40
            $region39: #{basic_conv_forward.1} parent=35 // pred_region
              %s243 = sand.u32 %s219, 7
              %p244 = scmp.eq.s32.totalorder %s243, 0
              // Predicated region
              $region52: #{basic_conv_forward.1} parent=39 // pred_check
                %p245 = pneg %p244
              $region53: #{basic_conv_forward.1} parent=39 // pred_check_branch
                %247 = sbr.rel (%p245) target = $region55
              $region54: #{basic_conv_forward.1} parent=39 // pred_region
                %s248 = sshrl.u32 %s219, 3
                %s249 = sshrl.u32 %s248, 5
                // While loop
                $region56: #{basic_conv_forward.1} parent=54 // loop_pre_header
                  _
                $region57: #{basic_conv_forward.1} parent=54 // loop_header
                  %s253 = sphi 0, %s255
                  %p254 = scmp.ge.s32.totalorder %s253, %s249
                  %s258 = sphi 0, %s391
                  %s259 = sphi %s218, %s394
                  %s260 = sphi %s208, %s395
                $region58: #{basic_conv_forward.1} parent=54 // loop_header_branch
                  %257 = sbr.rel (%p254) target = $region62
                $region59: #{basic_conv_forward.1} parent=54 // loop_body
                  %v261 = vld [vmem:[%s259] sm:$0xff]
                  %262 = vst [vmem:[%s260] sm:$0xff] %v261
                  %v263 = vld [vmem:[%s259 + $0x8] sm:$0xff]
                  %264 = vst [vmem:[%s260 + $0x8] sm:$0xff] %v263
                  %v265 = vld [vmem:[%s259 + $0x10] sm:$0xff]
                  %266 = vst [vmem:[%s260 + $0x10] sm:$0xff] %v265
                  %v267 = vld [vmem:[%s259 + $0x18] sm:$0xff]
                  %268 = vst [vmem:[%s260 + $0x18] sm:$0xff] %v267
                  %v269 = vld [vmem:[%s259 + $0x20] sm:$0xff]
                  %270 = vst [vmem:[%s260 + $0x20] sm:$0xff] %v269
                  %v271 = vld [vmem:[%s259 + $0x28] sm:$0xff]
                  %272 = vst [vmem:[%s260 + $0x28] sm:$0xff] %v271
                  %v273 = vld [vmem:[%s259 + $0x30] sm:$0xff]
                  %274 = vst [vmem:[%s260 + $0x30] sm:$0xff] %v273
                  %v275 = vld [vmem:[%s259 + $0x38] sm:$0xff]
                  %276 = vst [vmem:[%s260 + $0x38] sm:$0xff] %v275
                  %v277 = vld [vmem:[%s259 + $0x40] sm:$0xff]
                  %278 = vst [vmem:[%s260 + $0x40] sm:$0xff] %v277
                  %v279 = vld [vmem:[%s259 + $0x48] sm:$0xff]
                  %280 = vst [vmem:[%s260 + $0x48] sm:$0xff] %v279
                  %v281 = vld [vmem:[%s259 + $0x50] sm:$0xff]
                  %282 = vst [vmem:[%s260 + $0x50] sm:$0xff] %v281
                  %v283 = vld [vmem:[%s259 + $0x58] sm:$0xff]
                  %284 = vst [vmem:[%s260 + $0x58] sm:$0xff] %v283
                  %v285 = vld [vmem:[%s259 + $0x60] sm:$0xff]
                  %286 = vst [vmem:[%s260 + $0x60] sm:$0xff] %v285
                  %v287 = vld [vmem:[%s259 + $0x68] sm:$0xff]
                  %288 = vst [vmem:[%s260 + $0x68] sm:$0xff] %v287
                  %v289 = vld [vmem:[%s259 + $0x70] sm:$0xff]
                  %290 = vst [vmem:[%s260 + $0x70] sm:$0xff] %v289
                  %v291 = vld [vmem:[%s259 + $0x78] sm:$0xff]
                  %292 = vst [vmem:[%s260 + $0x78] sm:$0xff] %v291
                  %v293 = vld [vmem:[%s259 + $0x80] sm:$0xff]
                  %294 = vst [vmem:[%s260 + $0x80] sm:$0xff] %v293
                  %v295 = vld [vmem:[%s259 + $0x88] sm:$0xff]
                  %296 = vst [vmem:[%s260 + $0x88] sm:$0xff] %v295
                  %v297 = vld [vmem:[%s259 + $0x90] sm:$0xff]
                  %298 = vst [vmem:[%s260 + $0x90] sm:$0xff] %v297
                  %v299 = vld [vmem:[%s259 + $0x98] sm:$0xff]
                  %300 = vst [vmem:[%s260 + $0x98] sm:$0xff] %v299
                  %v301 = vld [vmem:[%s259 + $0xa0] sm:$0xff]
                  %302 = vst [vmem:[%s260 + $0xa0] sm:$0xff] %v301
                  %v303 = vld [vmem:[%s259 + $0xa8] sm:$0xff]
                  %304 = vst [vmem:[%s260 + $0xa8] sm:$0xff] %v303
                  %v305 = vld [vmem:[%s259 + $0xb0] sm:$0xff]
                  %306 = vst [vmem:[%s260 + $0xb0] sm:$0xff] %v305
                  %v307 = vld [vmem:[%s259 + $0xb8] sm:$0xff]
                  %308 = vst [vmem:[%s260 + $0xb8] sm:$0xff] %v307
                  %v309 = vld [vmem:[%s259 + $0xc0] sm:$0xff]
                  %310 = vst [vmem:[%s260 + $0xc0] sm:$0xff] %v309
                  %v311 = vld [vmem:[%s259 + $0xc8] sm:$0xff]
                  %312 = vst [vmem:[%s260 + $0xc8] sm:$0xff] %v311
                  %v313 = vld [vmem:[%s259 + $0xd0] sm:$0xff]
                  %314 = vst [vmem:[%s260 + $0xd0] sm:$0xff] %v313
                  %v315 = vld [vmem:[%s259 + $0xd8] sm:$0xff]
                  %316 = vst [vmem:[%s260 + $0xd8] sm:$0xff] %v315
                  %v317 = vld [vmem:[%s259 + $0xe0] sm:$0xff]
                  %318 = vst [vmem:[%s260 + $0xe0] sm:$0xff] %v317
                  %v319 = vld [vmem:[%s259 + $0xe8] sm:$0xff]
                  %320 = vst [vmem:[%s260 + $0xe8] sm:$0xff] %v319
                  %v321 = vld [vmem:[%s259 + $0xf0] sm:$0xff]
                  %322 = vst [vmem:[%s260 + $0xf0] sm:$0xff] %v321
                  %v323 = vld [vmem:[%s259 + $0xf8] sm:$0xff]
                  %324 = vst [vmem:[%s260 + $0xf8] sm:$0xff] %v323
                  %v325 = vld [vmem:[%s259 + $0x14] sm:$0xff]
                  %326 = vst [vmem:[%s260 + $0xc] sm:$0xff] %v325
                  %v327 = vld [vmem:[%s259 + $0x1c] sm:$0xff]
                  %328 = vst [vmem:[%s260 + $0x14] sm:$0xff] %v327
                  %v329 = vld [vmem:[%s259 + $0x24] sm:$0xff]
                  %330 = vst [vmem:[%s260 + $0x1c] sm:$0xff] %v329
                  %v331 = vld [vmem:[%s259 + $0x2c] sm:$0xff]
                  %332 = vst [vmem:[%s260 + $0x24] sm:$0xff] %v331
                  %v333 = vld [vmem:[%s259 + $0x34] sm:$0xff]
                  %334 = vst [vmem:[%s260 + $0x2c] sm:$0xff] %v333
                  %v335 = vld [vmem:[%s259 + $0x3c] sm:$0xff]
                  %336 = vst [vmem:[%s260 + $0x34] sm:$0xff] %v335
                  %v337 = vld [vmem:[%s259 + $0x44] sm:$0xff]
                  %338 = vst [vmem:[%s260 + $0x3c] sm:$0xff] %v337
                  %v339 = vld [vmem:[%s259 + $0x4c] sm:$0xff]
                  %340 = vst [vmem:[%s260 + $0x44] sm:$0xff] %v339
                  %v341 = vld [vmem:[%s259 + $0x54] sm:$0xff]
                  %342 = vst [vmem:[%s260 + $0x4c] sm:$0xff] %v341
                  %v343 = vld [vmem:[%s259 + $0x5c] sm:$0xff]
                  %344 = vst [vmem:[%s260 + $0x54] sm:$0xff] %v343
                  %v345 = vld [vmem:[%s259 + $0x64] sm:$0xff]
                  %346 = vst [vmem:[%s260 + $0x5c] sm:$0xff] %v345
                  %v347 = vld [vmem:[%s259 + $0x6c] sm:$0xff]
                  %348 = vst [vmem:[%s260 + $0x64] sm:$0xff] %v347
                  %v349 = vld [vmem:[%s259 + $0x74] sm:$0xff]
                  %350 = vst [vmem:[%s260 + $0x6c] sm:$0xff] %v349
                  %v351 = vld [vmem:[%s259 + $0x7c] sm:$0xff]
                  %352 = vst [vmem:[%s260 + $0x74] sm:$0xff] %v351
                  %v353 = vld [vmem:[%s259 + $0x84] sm:$0xff]
                  %354 = vst [vmem:[%s260 + $0x7c] sm:$0xff] %v353
                  %v355 = vld [vmem:[%s259 + $0x8c] sm:$0xff]
                  %356 = vst [vmem:[%s260 + $0x84] sm:$0xff] %v355
                  %v357 = vld [vmem:[%s259 + $0x94] sm:$0xff]
                  %358 = vst [vmem:[%s260 + $0x8c] sm:$0xff] %v357
                  %v359 = vld [vmem:[%s259 + $0x9c] sm:$0xff]
                  %360 = vst [vmem:[%s260 + $0x94] sm:$0xff] %v359
                  %v361 = vld [vmem:[%s259 + $0xa4] sm:$0xff]
                  %362 = vst [vmem:[%s260 + $0x9c] sm:$0xff] %v361
                  %v363 = vld [vmem:[%s259 + $0xac] sm:$0xff]
                  %364 = vst [vmem:[%s260 + $0xa4] sm:$0xff] %v363
                  %v365 = vld [vmem:[%s259 + $0xb4] sm:$0xff]
                  %366 = vst [vmem:[%s260 + $0xac] sm:$0xff] %v365
                  %v367 = vld [vmem:[%s259 + $0xbc] sm:$0xff]
                  %368 = vst [vmem:[%s260 + $0xb4] sm:$0xff] %v367
                  %v369 = vld [vmem:[%s259 + $0xc4] sm:$0xff]
                  %370 = vst [vmem:[%s260 + $0xbc] sm:$0xff] %v369
                  %v371 = vld [vmem:[%s259 + $0xcc] sm:$0xff]
                  %372 = vst [vmem:[%s260 + $0xc4] sm:$0xff] %v371
                  %v373 = vld [vmem:[%s259 + $0xd4] sm:$0xff]
                  %374 = vst [vmem:[%s260 + $0xcc] sm:$0xff] %v373
                  %v375 = vld [vmem:[%s259 + $0xdc] sm:$0xff]
                  %376 = vst [vmem:[%s260 + $0xd4] sm:$0xff] %v375
                  %v377 = vld [vmem:[%s259 + $0xe4] sm:$0xff]
                  %378 = vst [vmem:[%s260 + $0xdc] sm:$0xff] %v377
                  %v379 = vld [vmem:[%s259 + $0xec] sm:$0xff]
                  %380 = vst [vmem:[%s260 + $0xe4] sm:$0xff] %v379
                  %v381 = vld [vmem:[%s259 + $0xf4] sm:$0xff]
                  %382 = vst [vmem:[%s260 + $0xec] sm:$0xff] %v381
                  %v383 = vld [vmem:[%s259 + $0xfc] sm:$0xff]
                  %384 = vst [vmem:[%s260 + $0xf4] sm:$0xff] %v383
                  %v385 = vld [vmem:[%s259 + $0x104] sm:$0xff]
                  %386 = vst [vmem:[%s260 + $0xfc] sm:$0xff] %v385
                  %v387 = vld [vmem:[%s259 + $0x10c] sm:$0xff]
                  %388 = vst [vmem:[%s260 + $0x104] sm:$0xff] %v387
                  %s389 = sadd.s32 1, %s258
                  %p390 = scmp.ge.s32.totalorder %s389, %s249
                  %s391 = scalar_select %p390, 0, %s389
                  %s392 = smul.u32 %s391, 256
                  %s393 = smul.u32 %s391, 256
                  %s394 = scalar_lea.vmem %s218, %s392
                  %s395 = scalar_lea.vmem %s208, %s393 [#allocation4]
                $region60: #{basic_conv_forward.1} parent=54 // loop_footer
                  %s255 = sadd.s32 %s253, 1
                $region61: #{basic_conv_forward.1} parent=54 // loop_footer_branch
                  %252 = sbr.rel target = $region57
                $region62: #{basic_conv_forward.1} parent=54 // loop_exit
                  _
                %s396 = sshrl.u32 %s248, 5
                %s397 = sand.u32 %s248, 31
                %s398 = smul.u32 %s396, 32
                %s399 = smul.u32 128, %s398
                %s400 = sshra.s32 %s399, 4
                %s401 = scalar_lea.vmem %s218, %s400
                %s402 = smul.u32 128, %s398
                %s403 = sshra.s32 %s402, 4
                %s404 = scalar_lea.vmem %s208, %s403 [#allocation4]
                // While loop
                $region63: #{basic_conv_forward.1} parent=54 // loop_pre_header
                  _
                $region64: #{basic_conv_forward.1} parent=54 // loop_header
                  %s408 = sphi 0, %s410
                  %p409 = scmp.ge.s32.totalorder %s408, %s397
                  %s413 = sphi 0, %s422
                  %s414 = sphi %s401, %s425
                  %s415 = sphi %s404, %s426
                $region65: #{basic_conv_forward.1} parent=54 // loop_header_branch
                  %412 = sbr.rel (%p409) target = $region69
                $region66: #{basic_conv_forward.1} parent=54 // loop_body
                  %v416 = vld [vmem:[%s414] sm:$0xff]
                  %417 = vst [vmem:[%s415] sm:$0xff] %v416
                  %v418 = vld [vmem:[%s414 + $0x14] sm:$0xff]
                  %419 = vst [vmem:[%s415 + $0xc] sm:$0xff] %v418
                  %s420 = sadd.s32 1, %s413
                  %p421 = scmp.ge.s32.totalorder %s420, %s397
                  %s422 = scalar_select %p421, 0, %s420
                  %s423 = smul.u32 %s422, 8
                  %s424 = smul.u32 %s422, 8
                  %s425 = scalar_lea.vmem %s401, %s423
                  %s426 = scalar_lea.vmem %s404, %s424 [#allocation4]
                $region67: #{basic_conv_forward.1} parent=54 // loop_footer
                  %s410 = sadd.s32 %s408, 1
                $region68: #{basic_conv_forward.1} parent=54 // loop_footer_branch
                  %407 = sbr.rel target = $region64
                $region69: #{basic_conv_forward.1} parent=54 // loop_exit
                  _
              $region55: #{basic_conv_forward.1} parent=39 // pred_fallthru
                _
              %p427 = pneg %p244
              // Predicated region
              $region70: #{basic_conv_forward.1} parent=39 // pred_check
                _
              $region71: #{basic_conv_forward.1} parent=39 // pred_check_branch
                %429 = sbr.rel (%p244) target = $region73
              $region72: #{basic_conv_forward.1} parent=39 // pred_region
                %s430 = sand.u32 %s219, 7
                %s431 = ssub.s32 %s219, %s430
                %s432 = scalar_lea.vmem %s218, %s431
                %s433 = ssub.s32 %s219, %s430
                %s434 = scalar_lea.vmem %s208, %s433 [#allocation4]
                %s435 = sshrl.u32 %s219, 3
                %s436 = sshrl.u32 %s435, 5
                // While loop
                $region74: #{basic_conv_forward.1} parent=72 // loop_pre_header
                  _
                $region75: #{basic_conv_forward.1} parent=72 // loop_header
                  %s440 = sphi 0, %s442
                  %p441 = scmp.ge.s32.totalorder %s440, %s436
                  %s445 = sphi 0, %s578
                  %s446 = sphi %s218, %s581
                  %s447 = sphi %s208, %s582
                $region76: #{basic_conv_forward.1} parent=72 // loop_header_branch
                  %444 = sbr.rel (%p441) target = $region80
                $region77: #{basic_conv_forward.1} parent=72 // loop_body
                  %v448 = vld [vmem:[%s446] sm:$0xff]
                  %449 = vst [vmem:[%s447] sm:$0xff] %v448
                  %v450 = vld [vmem:[%s446 + $0x8] sm:$0xff]
                  %451 = vst [vmem:[%s447 + $0x8] sm:$0xff] %v450
                  %v452 = vld [vmem:[%s446 + $0x10] sm:$0xff]
                  %453 = vst [vmem:[%s447 + $0x10] sm:$0xff] %v452
                  %v454 = vld [vmem:[%s446 + $0x18] sm:$0xff]
                  %455 = vst [vmem:[%s447 + $0x18] sm:$0xff] %v454
                  %v456 = vld [vmem:[%s446 + $0x20] sm:$0xff]
                  %457 = vst [vmem:[%s447 + $0x20] sm:$0xff] %v456
                  %v458 = vld [vmem:[%s446 + $0x28] sm:$0xff]
                  %459 = vst [vmem:[%s447 + $0x28] sm:$0xff] %v458
                  %v460 = vld [vmem:[%s446 + $0x30] sm:$0xff]
                  %461 = vst [vmem:[%s447 + $0x30] sm:$0xff] %v460
                  %v462 = vld [vmem:[%s446 + $0x38] sm:$0xff]
                  %463 = vst [vmem:[%s447 + $0x38] sm:$0xff] %v462
                  %v464 = vld [vmem:[%s446 + $0x40] sm:$0xff]
                  %465 = vst [vmem:[%s447 + $0x40] sm:$0xff] %v464
                  %v466 = vld [vmem:[%s446 + $0x48] sm:$0xff]
                  %467 = vst [vmem:[%s447 + $0x48] sm:$0xff] %v466
                  %v468 = vld [vmem:[%s446 + $0x50] sm:$0xff]
                  %469 = vst [vmem:[%s447 + $0x50] sm:$0xff] %v468
                  %v470 = vld [vmem:[%s446 + $0x58] sm:$0xff]
                  %471 = vst [vmem:[%s447 + $0x58] sm:$0xff] %v470
                  %v472 = vld [vmem:[%s446 + $0x60] sm:$0xff]
                  %473 = vst [vmem:[%s447 + $0x60] sm:$0xff] %v472
                  %v474 = vld [vmem:[%s446 + $0x68] sm:$0xff]
                  %475 = vst [vmem:[%s447 + $0x68] sm:$0xff] %v474
                  %v476 = vld [vmem:[%s446 + $0x70] sm:$0xff]
                  %477 = vst [vmem:[%s447 + $0x70] sm:$0xff] %v476
                  %v478 = vld [vmem:[%s446 + $0x78] sm:$0xff]
                  %479 = vst [vmem:[%s447 + $0x78] sm:$0xff] %v478
                  %v480 = vld [vmem:[%s446 + $0x80] sm:$0xff]
                  %481 = vst [vmem:[%s447 + $0x80] sm:$0xff] %v480
                  %v482 = vld [vmem:[%s446 + $0x88] sm:$0xff]
                  %483 = vst [vmem:[%s447 + $0x88] sm:$0xff] %v482
                  %v484 = vld [vmem:[%s446 + $0x90] sm:$0xff]
                  %485 = vst [vmem:[%s447 + $0x90] sm:$0xff] %v484
                  %v486 = vld [vmem:[%s446 + $0x98] sm:$0xff]
                  %487 = vst [vmem:[%s447 + $0x98] sm:$0xff] %v486
                  %v488 = vld [vmem:[%s446 + $0xa0] sm:$0xff]
                  %489 = vst [vmem:[%s447 + $0xa0] sm:$0xff] %v488
                  %v490 = vld [vmem:[%s446 + $0xa8] sm:$0xff]
                  %491 = vst [vmem:[%s447 + $0xa8] sm:$0xff] %v490
                  %v492 = vld [vmem:[%s446 + $0xb0] sm:$0xff]
                  %493 = vst [vmem:[%s447 + $0xb0] sm:$0xff] %v492
                  %v494 = vld [vmem:[%s446 + $0xb8] sm:$0xff]
                  %495 = vst [vmem:[%s447 + $0xb8] sm:$0xff] %v494
                  %v496 = vld [vmem:[%s446 + $0xc0] sm:$0xff]
                  %497 = vst [vmem:[%s447 + $0xc0] sm:$0xff] %v496
                  %v498 = vld [vmem:[%s446 + $0xc8] sm:$0xff]
                  %499 = vst [vmem:[%s447 + $0xc8] sm:$0xff] %v498
                  %v500 = vld [vmem:[%s446 + $0xd0] sm:$0xff]
                  %501 = vst [vmem:[%s447 + $0xd0] sm:$0xff] %v500
                  %v502 = vld [vmem:[%s446 + $0xd8] sm:$0xff]
                  %503 = vst [vmem:[%s447 + $0xd8] sm:$0xff] %v502
                  %v504 = vld [vmem:[%s446 + $0xe0] sm:$0xff]
                  %505 = vst [vmem:[%s447 + $0xe0] sm:$0xff] %v504
                  %v506 = vld [vmem:[%s446 + $0xe8] sm:$0xff]
                  %507 = vst [vmem:[%s447 + $0xe8] sm:$0xff] %v506
                  %v508 = vld [vmem:[%s446 + $0xf0] sm:$0xff]
                  %509 = vst [vmem:[%s447 + $0xf0] sm:$0xff] %v508
                  %v510 = vld [vmem:[%s446 + $0xf8] sm:$0xff]
                  %511 = vst [vmem:[%s447 + $0xf8] sm:$0xff] %v510
                  %v512 = vld [vmem:[%s446 + $0x14] sm:$0xff]
                  %513 = vst [vmem:[%s447 + $0xc] sm:$0xff] %v512
                  %v514 = vld [vmem:[%s446 + $0x1c] sm:$0xff]
                  %515 = vst [vmem:[%s447 + $0x14] sm:$0xff] %v514
                  %v516 = vld [vmem:[%s446 + $0x24] sm:$0xff]
                  %517 = vst [vmem:[%s447 + $0x1c] sm:$0xff] %v516
                  %v518 = vld [vmem:[%s446 + $0x2c] sm:$0xff]
                  %519 = vst [vmem:[%s447 + $0x24] sm:$0xff] %v518
                  %v520 = vld [vmem:[%s446 + $0x34] sm:$0xff]
                  %521 = vst [vmem:[%s447 + $0x2c] sm:$0xff] %v520
                  %v522 = vld [vmem:[%s446 + $0x3c] sm:$0xff]
                  %523 = vst [vmem:[%s447 + $0x34] sm:$0xff] %v522
                  %v524 = vld [vmem:[%s446 + $0x44] sm:$0xff]
                  %525 = vst [vmem:[%s447 + $0x3c] sm:$0xff] %v524
                  %v526 = vld [vmem:[%s446 + $0x4c] sm:$0xff]
                  %527 = vst [vmem:[%s447 + $0x44] sm:$0xff] %v526
                  %v528 = vld [vmem:[%s446 + $0x54] sm:$0xff]
                  %529 = vst [vmem:[%s447 + $0x4c] sm:$0xff] %v528
                  %v530 = vld [vmem:[%s446 + $0x5c] sm:$0xff]
                  %531 = vst [vmem:[%s447 + $0x54] sm:$0xff] %v530
                  %v532 = vld [vmem:[%s446 + $0x64] sm:$0xff]
                  %533 = vst [vmem:[%s447 + $0x5c] sm:$0xff] %v532
                  %v534 = vld [vmem:[%s446 + $0x6c] sm:$0xff]
                  %535 = vst [vmem:[%s447 + $0x64] sm:$0xff] %v534
                  %v536 = vld [vmem:[%s446 + $0x74] sm:$0xff]
                  %537 = vst [vmem:[%s447 + $0x6c] sm:$0xff] %v536
                  %v538 = vld [vmem:[%s446 + $0x7c] sm:$0xff]
                  %539 = vst [vmem:[%s447 + $0x74] sm:$0xff] %v538
                  %v540 = vld [vmem:[%s446 + $0x84] sm:$0xff]
                  %541 = vst [vmem:[%s447 + $0x7c] sm:$0xff] %v540
                  %v542 = vld [vmem:[%s446 + $0x8c] sm:$0xff]
                  %543 = vst [vmem:[%s447 + $0x84] sm:$0xff] %v542
                  %v544 = vld [vmem:[%s446 + $0x94] sm:$0xff]
                  %545 = vst [vmem:[%s447 + $0x8c] sm:$0xff] %v544
                  %v546 = vld [vmem:[%s446 + $0x9c] sm:$0xff]
                  %547 = vst [vmem:[%s447 + $0x94] sm:$0xff] %v546
                  %v548 = vld [vmem:[%s446 + $0xa4] sm:$0xff]
                  %549 = vst [vmem:[%s447 + $0x9c] sm:$0xff] %v548
                  %v550 = vld [vmem:[%s446 + $0xac] sm:$0xff]
                  %551 = vst [vmem:[%s447 + $0xa4] sm:$0xff] %v550
                  %v552 = vld [vmem:[%s446 + $0xb4] sm:$0xff]
                  %553 = vst [vmem:[%s447 + $0xac] sm:$0xff] %v552
                  %v554 = vld [vmem:[%s446 + $0xbc] sm:$0xff]
                  %555 = vst [vmem:[%s447 + $0xb4] sm:$0xff] %v554
                  %v556 = vld [vmem:[%s446 + $0xc4] sm:$0xff]
                  %557 = vst [vmem:[%s447 + $0xbc] sm:$0xff] %v556
                  %v558 = vld [vmem:[%s446 + $0xcc] sm:$0xff]
                  %559 = vst [vmem:[%s447 + $0xc4] sm:$0xff] %v558
                  %v560 = vld [vmem:[%s446 + $0xd4] sm:$0xff]
                  %561 = vst [vmem:[%s447 + $0xcc] sm:$0xff] %v560
                  %v562 = vld [vmem:[%s446 + $0xdc] sm:$0xff]
                  %563 = vst [vmem:[%s447 + $0xd4] sm:$0xff] %v562
                  %v564 = vld [vmem:[%s446 + $0xe4] sm:$0xff]
                  %565 = vst [vmem:[%s447 + $0xdc] sm:$0xff] %v564
                  %v566 = vld [vmem:[%s446 + $0xec] sm:$0xff]
                  %567 = vst [vmem:[%s447 + $0xe4] sm:$0xff] %v566
                  %v568 = vld [vmem:[%s446 + $0xf4] sm:$0xff]
                  %569 = vst [vmem:[%s447 + $0xec] sm:$0xff] %v568
                  %v570 = vld [vmem:[%s446 + $0xfc] sm:$0xff]
                  %571 = vst [vmem:[%s447 + $0xf4] sm:$0xff] %v570
                  %v572 = vld [vmem:[%s446 + $0x104] sm:$0xff]
                  %573 = vst [vmem:[%s447 + $0xfc] sm:$0xff] %v572
                  %v574 = vld [vmem:[%s446 + $0x10c] sm:$0xff]
                  %575 = vst [vmem:[%s447 + $0x104] sm:$0xff] %v574
                  %s576 = sadd.s32 1, %s445
                  %p577 = scmp.ge.s32.totalorder %s576, %s436
                  %s578 = scalar_select %p577, 0, %s576
                  %s579 = smul.u32 %s578, 256
                  %s580 = smul.u32 %s578, 256
                  %s581 = scalar_lea.vmem %s218, %s579
                  %s582 = scalar_lea.vmem %s208, %s580 [#allocation4]
                $region78: #{basic_conv_forward.1} parent=72 // loop_footer
                  %s442 = sadd.s32 %s440, 1
                $region79: #{basic_conv_forward.1} parent=72 // loop_footer_branch
                  %439 = sbr.rel target = $region75
                $region80: #{basic_conv_forward.1} parent=72 // loop_exit
                  _
                %s583 = sshrl.u32 %s435, 5
                %s584 = sand.u32 %s435, 31
                %s585 = smul.u32 %s583, 32
                %s586 = smul.u32 128, %s585
                %s587 = sshra.s32 %s586, 4
                %s588 = scalar_lea.vmem %s218, %s587
                %s589 = smul.u32 128, %s585
                %s590 = sshra.s32 %s589, 4
                %s591 = scalar_lea.vmem %s208, %s590 [#allocation4]
                // While loop
                $region81: #{basic_conv_forward.1} parent=72 // loop_pre_header
                  _
                $region82: #{basic_conv_forward.1} parent=72 // loop_header
                  %s595 = sphi 0, %s597
                  %p596 = scmp.ge.s32.totalorder %s595, %s584
                  %s600 = sphi 0, %s609
                  %s601 = sphi %s588, %s612
                  %s602 = sphi %s591, %s613
                $region83: #{basic_conv_forward.1} parent=72 // loop_header_branch
                  %599 = sbr.rel (%p596) target = $region87
                $region84: #{basic_conv_forward.1} parent=72 // loop_body
                  %v603 = vld [vmem:[%s601] sm:$0xff]
                  %604 = vst [vmem:[%s602] sm:$0xff] %v603
                  %v605 = vld [vmem:[%s601 + $0x14] sm:$0xff]
                  %606 = vst [vmem:[%s602 + $0xc] sm:$0xff] %v605
                  %s607 = sadd.s32 1, %s600
                  %p608 = scmp.ge.s32.totalorder %s607, %s584
                  %s609 = scalar_select %p608, 0, %s607
                  %s610 = smul.u32 %s609, 8
                  %s611 = smul.u32 %s609, 8
                  %s612 = scalar_lea.vmem %s588, %s610
                  %s613 = scalar_lea.vmem %s591, %s611 [#allocation4]
                $region85: #{basic_conv_forward.1} parent=72 // loop_footer
                  %s597 = sadd.s32 %s595, 1
                $region86: #{basic_conv_forward.1} parent=72 // loop_footer_branch
                  %594 = sbr.rel target = $region82
                $region87: #{basic_conv_forward.1} parent=72 // loop_exit
                  _
                %s614 = sshllo.u32 0, %s430
                loop: start=0, step=1, limit=1
                $region88: #{basic_conv_forward.1} parent=72 // loop_pre_header
                  _
                $region89: #{basic_conv_forward.1} parent=72 // loop_header
                  %s616 = sphi 0, %s620
                  %p617 = scmp.ge.s32.totalorder %s616, 1
                  %s621 = sphi %s432, %s432
                  %s622 = sphi %s434, %s434
                $region90: #{basic_conv_forward.1} parent=72 // loop_header_branch
                  %619 = sbr.rel (%p617) target = $region94
                $region91: #{basic_conv_forward.1} parent=72 // loop_body
                  %v623 = vld [vmem:[%s621] sm:%s614]
                  %624 = vst [vmem:[%s622] sm:%s614] %v623
                  %v625 = vld [vmem:[%s621 + $0x14] sm:%s614]
                  %626 = vst [vmem:[%s622 + $0xc] sm:%s614] %v625
                $region92: #{basic_conv_forward.1} parent=72 // loop_footer
                  %s620 = sadd.s32 1, %s616
                $region93: #{basic_conv_forward.1} parent=72 // loop_footer_branch
                  %615 = sbr.rel target = $region89
                $region94: #{basic_conv_forward.1} parent=72 // loop_exit
                  _
              $region73: #{basic_conv_forward.1} parent=39 // pred_fallthru
                _
            $region40: #{basic_conv_forward.1} parent=35 // pred_fallthru
              _
            // Predicated region
            $region41: #{basic_conv_forward.1} parent=35 // pred_check
              %p227 = pneg %p223
            $region42: #{basic_conv_forward.1} parent=35 // pred_check_branch
              %229 = sbr.rel (%p227) target = $region44
            $region43: #{basic_conv_forward.1} parent=35 // pred_region
              %s230 = sshllo.u32 0, %s219
              loop: start=0, step=1, limit=1
              $region45: #{basic_conv_forward.1} parent=43 // loop_pre_header
                _
              $region46: #{basic_conv_forward.1} parent=43 // loop_header
                %s232 = sphi 0, %s236
                %p233 = scmp.ge.s32.totalorder %s232, 1
                %s237 = sphi %s218, %s218
                %s238 = sphi %s208, %s208
              $region47: #{basic_conv_forward.1} parent=43 // loop_header_branch
                %235 = sbr.rel (%p233) target = $region51
              $region48: #{basic_conv_forward.1} parent=43 // loop_body
                %v239 = vld [vmem:[%s237] sm:%s230]
                %240 = vst [vmem:[%s238] sm:%s230] %v239
                %v241 = vld [vmem:[%s237 + $0x14] sm:%s230]
                %242 = vst [vmem:[%s238 + $0xc] sm:%s230] %v241
              $region49: #{basic_conv_forward.1} parent=43 // loop_footer
                %s236 = sadd.s32 1, %s232
              $region50: #{basic_conv_forward.1} parent=43 // loop_footer_branch
                %231 = sbr.rel target = $region46
              $region51: #{basic_conv_forward.1} parent=43 // loop_exit
                _
            $region44: #{basic_conv_forward.1} parent=35 // pred_fallthru
              _
          $region36: #{basic_conv_forward.1} parent=31 // pred_fallthru
            _
          %627 = vnop
        $region32: #{basic_conv_forward.1} parent=27 // pred_fallthru
          _
        // Predicated region
        $region95: #{basic_conv_forward.1} parent=27 // pred_check
          %p628 = pneg %p77
        $region96: #{basic_conv_forward.1} parent=27 // pred_check_branch
          %630 = sbr.rel (%p628) target = $region98
        $region97: #{basic_conv_forward.1} parent=27 // pred_region
          %s631 = sand.u32 %s67, 1
          %s632 = sand.u32 %s67, 1
          %s633 = smul.addr %s632, 8
          %s634 = scalar_lea.vmem [#allocation5], %s633
          %s635 = sadd.s32 %s19, 1
          %s636 = smul.u32 %s635, 3
          %s637 = smul.addr %s18, 10
          %s638 = sadd.s32 %s636, %s637
          %s639 = smul.addr %s638, 4
          %s640 = scalar_lea.vmem %s1, %s639
          // Predicated region
          $region99: #{basic_conv_forward.1} parent=97 // pred_check
            _
          $region100: #{basic_conv_forward.1} parent=97 // pred_check_branch
            %642 = sbr.rel (0) target = $region102
          $region101: #{basic_conv_forward.1} parent=97 // pred_region
            // Predicated region
            $region103: #{basic_conv_forward.1} parent=101 // pred_check
              _
            $region104: #{basic_conv_forward.1} parent=101 // pred_check_branch
              %644 = sbr.rel target = $region106
            $region105: #{basic_conv_forward.1} parent=101 // pred_region
              // Predicated region
              $region118: #{basic_conv_forward.1} parent=105 // pred_check
                _
              $region119: #{basic_conv_forward.1} parent=105 // pred_check_branch
                %661 = sbr.rel (0) target = $region121
              $region120: #{basic_conv_forward.1} parent=105 // pred_region
                loop: start=0, step=1, limit=1
                $region122: #{basic_conv_forward.1} parent=120 // loop_pre_header
                  _
                $region123: #{basic_conv_forward.1} parent=120 // loop_header
                  %s663 = sphi 0, %s667
                  %p664 = scmp.ge.s32.totalorder %s663, 1
                  %s668 = sphi %s640, %s640
                  %s669 = sphi %s634, %s634
                $region124: #{basic_conv_forward.1} parent=120 // loop_header_branch
                  %666 = sbr.rel (%p664) target = $region128
                $region125: #{basic_conv_forward.1} parent=120 // loop_body
                  _
                $region126: #{basic_conv_forward.1} parent=120 // loop_footer
                  %s667 = sadd.s32 1, %s663
                $region127: #{basic_conv_forward.1} parent=120 // loop_footer_branch
                  %662 = sbr.rel target = $region123
                $region128: #{basic_conv_forward.1} parent=120 // loop_exit
                  _
                loop: start=0, step=1, limit=1
                $region129: #{basic_conv_forward.1} parent=120 // loop_pre_header
                  _
                $region130: #{basic_conv_forward.1} parent=120 // loop_header
                  %s672 = sphi 0, %s676
                  %p673 = scmp.ge.s32.totalorder %s672, 1
                  %s677 = sphi %s640, %s640
                  %s678 = sphi %s634, %s634
                $region131: #{basic_conv_forward.1} parent=120 // loop_header_branch
                  %675 = sbr.rel (%p673) target = $region135
                $region132: #{basic_conv_forward.1} parent=120 // loop_body
                  %v679 = vld [vmem:[%s677] sm:$0xf]
                  %680 = vst [vmem:[%s678] sm:$0xf] %v679
                  %v681 = vld [vmem:[%s677 + $0x14] sm:$0xf]
                  %682 = vst [vmem:[%s678 + $0x4] sm:$0xf] %v681
                $region133: #{basic_conv_forward.1} parent=120 // loop_footer
                  %s676 = sadd.s32 1, %s672
                $region134: #{basic_conv_forward.1} parent=120 // loop_footer_branch
                  %671 = sbr.rel target = $region130
                $region135: #{basic_conv_forward.1} parent=120 // loop_exit
                  _
              $region121: #{basic_conv_forward.1} parent=105 // pred_fallthru
                _
            $region106: #{basic_conv_forward.1} parent=101 // pred_fallthru
              _
            // Predicated region
            $region107: #{basic_conv_forward.1} parent=101 // pred_check
              _
            $region108: #{basic_conv_forward.1} parent=101 // pred_check_branch
              %646 = sbr.rel (0) target = $region110
            $region109: #{basic_conv_forward.1} parent=101 // pred_region
              loop: start=0, step=1, limit=1
              $region111: #{basic_conv_forward.1} parent=109 // loop_pre_header
                _
              $region112: #{basic_conv_forward.1} parent=109 // loop_header
                %s649 = sphi 0, %s653
                %p650 = scmp.ge.s32.totalorder %s649, 1
                %s654 = sphi %s640, %s640
                %s655 = sphi %s634, %s634
              $region113: #{basic_conv_forward.1} parent=109 // loop_header_branch
                %652 = sbr.rel (%p650) target = $region117
              $region114: #{basic_conv_forward.1} parent=109 // loop_body
                %v656 = vld [vmem:[%s654] sm:$0xf]
                %657 = vst [vmem:[%s655] sm:$0xf] %v656
                %v658 = vld [vmem:[%s654 + $0x14] sm:$0xf]
                %659 = vst [vmem:[%s655 + $0x4] sm:$0xf] %v658
              $region115: #{basic_conv_forward.1} parent=109 // loop_footer
                %s653 = sadd.s32 1, %s649
              $region116: #{basic_conv_forward.1} parent=109 // loop_footer_branch
                %648 = sbr.rel target = $region112
              $region117: #{basic_conv_forward.1} parent=109 // loop_exit
                _
            $region110: #{basic_conv_forward.1} parent=101 // pred_fallthru
              _
          $region102: #{basic_conv_forward.1} parent=97 // pred_fallthru
            _
          %683 = vnop
        $region98: #{basic_conv_forward.1} parent=27 // pred_fallthru
          _
      $region28: #{basic_conv_forward.1} parent=5 // pred_fallthru
        _
      %p684 = scmp.le.s32.totalorder 1, %s11
      %p685 = scmp.lt.s32.totalorder %s11, 3
      %p686 = pnand %p684, %p685
      %p687 = pneg %p686
      // Predicated region
      $region136: #{basic_conv_forward.1} parent=5 // pred_check
        _
      $region137: #{basic_conv_forward.1} parent=5 // pred_check_branch
        %689 = sbr.rel (%p686) target = $region139
      $region138: #{basic_conv_forward.1} parent=5 // pred_region
        %s690 = ssub.s32 %s11, 1
        %s691 = sand.u32 %s38, 1
        %s692 = sand.u32 %s38, 1
        %s693 = smul.addr %s692, 24
        %s694 = scalar_lea.vmem [#allocation4], %s693
        // Predicated region
        $region140: #{basic_conv_forward.1} parent=138 // pred_check
          %p695 = pneg %p51
        $region141: #{basic_conv_forward.1} parent=138 // pred_check_branch
          %697 = sbr.rel (%p695) target = $region143
        $region142: #{basic_conv_forward.1} parent=138 // pred_region
          _
        $region143: #{basic_conv_forward.1} parent=138 // pred_fallthru
          _
        %s698 = sand.u32 %s70, 1
        %s699 = sand.u32 %s70, 1
        %s700 = smul.addr %s699, 8
        %s701 = scalar_lea.vmem [#allocation5], %s700
        // Predicated region
        $region144: #{basic_conv_forward.1} parent=138 // pred_check
          %p702 = pneg %p83
        $region145: #{basic_conv_forward.1} parent=138 // pred_check_branch
          %704 = sbr.rel (%p702) target = $region147
        $region146: #{basic_conv_forward.1} parent=138 // pred_region
          _
        $region147: #{basic_conv_forward.1} parent=138 // pred_fallthru
          _
        %s705 = sand.u32 %s38, 1
        %s706 = sand.u32 %s38, 1
        %s707 = smul.addr %s706, 24
        %s708 = scalar_lea.vmem [#allocation4], %s707
        %p709 = pneg %p51
        %p710 = pneg %p48
        %s711 = sand.u32 %s70, 1
        %s712 = sand.u32 %s70, 1
        %s713 = smul.addr %s712, 8
        %s714 = scalar_lea.vmem [#allocation5], %s713
        %p715 = pneg %p83
        %p716 = pneg %p80
        %p717 = pneg %p104
        %p718 = pneg %p101
        %p719 = pneg %p125
        %p720 = pneg %p122
        %p721 = pneg %p146
        %p722 = pneg %p143
        %p723 = pneg %p174
        %p724 = pneg %p171
        %s725 = smul.u32 3, %s21
        %p726 = scmp.lt.s32.totalorder %s20, 1
        %s727 = scalar_select %p726, %s20, 1
        %p728 = scmp.lt.s32.totalorder %s725, 2
        %s729 = scalar_select %p728, %s725, 2
        %s730 = smul.addr %s727, 3
        %s731 = sadd.s32 %s729, %s730
        %s732 = smul.addr %s731, 8
        %s733 = scalar_lea.vmem %s5, %s732
        %s734 = smul.u32 3, %s21
        %s735 = ssub.s32 5, %s734
        %p736 = scmp.lt.s32.totalorder %s735, 3
        %s737 = scalar_select %p736, %s735, 3
        %s738 = smul.u32 128, %s737
        %s739 = sadd.s32 %s21, 1
        %s740 = smul.u32 %s739, 3
        %s741 = smul.u32 3, %s21
        %p742 = scmp.lt.s32.totalorder %s20, 1
        %s743 = scalar_select %p742, %s20, 1
        %p744 = scmp.lt.s32.totalorder %s741, 2
        %s745 = scalar_select %p744, %s741, 2
        %s746 = smul.addr %s743, 3
        %s747 = sadd.s32 %s745, %s746
        %s748 = smul.addr %s747, 8
        %s749 = scalar_lea.vmem %s5, %s748
        %s750 = smul.u32 3, %s21
        %v752 = vld [vmem:[%s694] sm:$0xff]
        %v753 = vld [vmem:[%s694 + $0x8] sm:$0xf]
        %v754 = vld [vmem:[%s694 + $0xc] sm:$0xff]
        %v755 = vld [vmem:[%s694 + $0x14] sm:$0xf]
        %v760 = vunpack.c.l.b16 %v752
        %v761 = vunpack.c.h.b16 %v752
        %v762 = vunpack.c.l.b16 %v753
        %v763 = vunpack.c.l.b16 %v754
        %v764 = vunpack.c.h.b16 %v754
        %v765 = vunpack.c.l.b16 %v755
        %v766 = vpack.c.b16 %v763, %v760
        %v767 = vpack.c.b16 %v764, %v761
        %v768 = vpack.c.b16 %v765, %v762
        %772 = vst [vmem:[#allocation2] sm:$0xff] %v766
        %773 = vst [vmem:[#allocation2 + $0x8] sm:$0xff] %v767
        %774 = vst [vmem:[#allocation2 + $0x10] sm:$0xff] %v768
        %v775 = vld [vmem:[%s701] sm:$0xf]
        %v776 = vld [vmem:[%s701 + $0x4] sm:$0xf]
        %v779 = vunpack.c.l.b16 %v775
        %v780 = vunpack.c.l.b16 %v776
        %v781 = vpack.c.b16 %v780, %v779
        %783 = vst [vmem:[#allocation2 + $0x18] sm:$0xff] %v781
        %v784 = vld [vmem:[#allocation2] sm:$0xff]
        %v785 = vld [vmem:[#allocation2 + $0x8] sm:$0xff]
        %v786 = vld [vmem:[#allocation2 + $0x10] sm:$0xff]
        %787 = vst [vmem:[#allocation3] sm:$0xff] %v784
        %788 = vst [vmem:[#allocation3 + $0x8] sm:$0xff] %v785
        %789 = vst [vmem:[#allocation3 + $0x10] sm:$0xff] %v786
        %v790 = vld [vmem:[#allocation2] sm:$0xff]
        %v791 = vld [vmem:[#allocation2 + $0x8] sm:$0xff]
        %v792 = vld [vmem:[#allocation2 + $0x10] sm:$0xff]
        %v793 = vld [vmem:[#allocation2 + $0x18] sm:$0xff]
        %798 = vrot.lane.b32.xlu0 %v790, 127
        %v799 = vpop.permute.xlu0 %798
        %800 = vrot.lane.b32.xlu0 %v791, 127
        %v801 = vpop.permute.xlu0 %800
        %802 = vrot.lane.b32.xlu0 %v792, 127
        %v803 = vpop.permute.xlu0 %802
        %804 = vrot.lane.b32.xlu0 %v793, 127
        %v805 = vpop.permute.xlu0 %804
        %vm806 = vcmask 1039360
        %v807 = vsel %vm806, %v799, %v801
        %v808 = vsel %vm806, %v801, %v803
        %v809 = vsel %vm806, %v803, %v805
        %813 = vst [vmem:[#allocation3 + $0x18] sm:$0xff] %v807
        %814 = vst [vmem:[#allocation3 + $0x20] sm:$0xff] %v808
        %815 = vst [vmem:[#allocation3 + $0x28] sm:$0xff] %v809
        %v816 = vld [vmem:[#allocation2] sm:$0xff]
        %v817 = vld [vmem:[#allocation2 + $0x8] sm:$0xff]
        %v818 = vld [vmem:[#allocation2 + $0x10] sm:$0xff]
        %v819 = vld [vmem:[#allocation2 + $0x18] sm:$0xff]
        %824 = vrot.lane.b32.xlu0 %v816, 126
        %v825 = vpop.permute.xlu0 %824
        %826 = vrot.lane.b32.xlu0 %v817, 126
        %v827 = vpop.permute.xlu0 %826
        %828 = vrot.lane.b32.xlu0 %v818, 126
        %v829 = vpop.permute.xlu0 %828
        %830 = vrot.lane.b32.xlu0 %v819, 126
        %v831 = vpop.permute.xlu0 %830
        %vm832 = vcmask 1031168
        %v833 = vsel %vm832, %v825, %v827
        %v834 = vsel %vm832, %v827, %v829
        %v835 = vsel %vm832, %v829, %v831
        %839 = vst [vmem:[#allocation3 + $0x30] sm:$0xff] %v833
        %840 = vst [vmem:[#allocation3 + $0x38] sm:$0xff] %v834
        %841 = vst [vmem:[#allocation3 + $0x40] sm:$0xff] %v835
        %v842 = vld [vmem:[#allocation2] sm:$0xff]
        %v843 = vld [vmem:[#allocation2 + $0x8] sm:$0xff]
        %v844 = vld [vmem:[#allocation2 + $0x10] sm:$0xff]
        %v845 = vld [vmem:[#allocation2 + $0x18] sm:$0xff]
        %850 = vrot.lane.b32.xlu0 %v842, 110
        %v851 = vpop.permute.xlu0 %850
        %852 = vrot.lane.b32.xlu0 %v843, 110
        %v853 = vpop.permute.xlu0 %852
        %854 = vrot.lane.b32.xlu0 %v844, 110
        %v855 = vpop.permute.xlu0 %854
        %856 = vrot.lane.b32.xlu0 %v845, 110
        %v857 = vpop.permute.xlu0 %856
        %vm858 = vcmask 900096
        %v859 = vsel %vm858, %v851, %v853
        %v860 = vsel %vm858, %v853, %v855
        %v861 = vsel %vm858, %v855, %v857
        %865 = vst [vmem:[#allocation3 + $0x48] sm:$0xff] %v859
        %866 = vst [vmem:[#allocation3 + $0x50] sm:$0xff] %v860
        %867 = vst [vmem:[#allocation3 + $0x58] sm:$0xff] %v861
        %v868 = vld [vmem:[#allocation2] sm:$0xff]
        %v869 = vld [vmem:[#allocation2 + $0x8] sm:$0xff]
        %v870 = vld [vmem:[#allocation2 + $0x10] sm:$0xff]
        %v871 = vld [vmem:[#allocation2 + $0x18] sm:$0xff]
        %876 = vrot.lane.b32.xlu0 %v868, 109
        %v877 = vpop.permute.xlu0 %876
        %878 = vrot.lane.b32.xlu0 %v869, 109
        %v879 = vpop.permute.xlu0 %878
        %880 = vrot.lane.b32.xlu0 %v870, 109
        %v881 = vpop.permute.xlu0 %880
        %882 = vrot.lane.b32.xlu0 %v871, 109
        %v883 = vpop.permute.xlu0 %882
        %vm884 = vcmask 891904
        %v885 = vsel %vm884, %v877, %v879
        %v886 = vsel %vm884, %v879, %v881
        %v887 = vsel %vm884, %v881, %v883
        %891 = vst [vmem:[#allocation3 + $0x60] sm:$0xff] %v885
        %892 = vst [vmem:[#allocation3 + $0x68] sm:$0xff] %v886
        %893 = vst [vmem:[#allocation3 + $0x70] sm:$0xff] %v887
        %v894 = vld [vmem:[#allocation2] sm:$0xff]
        %v895 = vld [vmem:[#allocation2 + $0x8] sm:$0xff]
        %v896 = vld [vmem:[#allocation2 + $0x10] sm:$0xff]
        %v897 = vld [vmem:[#allocation2 + $0x18] sm:$0xff]
        %902 = vrot.lane.b32.xlu0 %v894, 108
        %v903 = vpop.permute.xlu0 %902
        %904 = vrot.lane.b32.xlu0 %v895, 108
        %v905 = vpop.permute.xlu0 %904
        %906 = vrot.lane.b32.xlu0 %v896, 108
        %v907 = vpop.permute.xlu0 %906
        %908 = vrot.lane.b32.xlu0 %v897, 108
        %v909 = vpop.permute.xlu0 %908
        %vm910 = vcmask 883712
        %v911 = vsel %vm910, %v903, %v905
        %v912 = vsel %vm910, %v905, %v907
        %v913 = vsel %vm910, %v907, %v909
        %917 = vst [vmem:[#allocation3 + $0x78] sm:$0xff] %v911
        %918 = vst [vmem:[#allocation3 + $0x80] sm:$0xff] %v912
        %919 = vst [vmem:[#allocation3 + $0x88] sm:$0xff] %v913
        %v920 = vld [vmem:[#allocation2] sm:$0xff]
        %v921 = vld [vmem:[#allocation2 + $0x8] sm:$0xff]
        %v922 = vld [vmem:[#allocation2 + $0x10] sm:$0xff]
        %v923 = vld [vmem:[#allocation2 + $0x18] sm:$0xff]
        %928 = vrot.lane.b32.xlu0 %v920, 92
        %v929 = vpop.permute.xlu0 %928
        %930 = vrot.lane.b32.xlu0 %v921, 92
        %v931 = vpop.permute.xlu0 %930
        %932 = vrot.lane.b32.xlu0 %v922, 92
        %v933 = vpop.permute.xlu0 %932
        %934 = vrot.lane.b32.xlu0 %v923, 92
        %v935 = vpop.permute.xlu0 %934
        %vm936 = vcmask 752640
        %v937 = vsel %vm936, %v929, %v931
        %v938 = vsel %vm936, %v931, %v933
        %v939 = vsel %vm936, %v933, %v935
        %943 = vst [vmem:[#allocation3 + $0x90] sm:$0xff] %v937
        %944 = vst [vmem:[#allocation3 + $0x98] sm:$0xff] %v938
        %945 = vst [vmem:[#allocation3 + $0xa0] sm:$0xff] %v939
        %v946 = vld [vmem:[#allocation2] sm:$0xff]
        %v947 = vld [vmem:[#allocation2 + $0x8] sm:$0xff]
        %v948 = vld [vmem:[#allocation2 + $0x10] sm:$0xff]
        %v949 = vld [vmem:[#allocation2 + $0x18] sm:$0xff]
        %954 = vrot.lane.b32.xlu0 %v946, 91
        %v955 = vpop.permute.xlu0 %954
        %956 = vrot.lane.b32.xlu0 %v947, 91
        %v957 = vpop.permute.xlu0 %956
        %958 = vrot.lane.b32.xlu0 %v948, 91
        %v959 = vpop.permute.xlu0 %958
        %960 = vrot.lane.b32.xlu0 %v949, 91
        %v961 = vpop.permute.xlu0 %960
        %vm962 = vcmask 744448
        %v963 = vsel %vm962, %v955, %v957
        %v964 = vsel %vm962, %v957, %v959
        %v965 = vsel %vm962, %v959, %v961
        %969 = vst [vmem:[#allocation3 + $0xa8] sm:$0xff] %v963
        %970 = vst [vmem:[#allocation3 + $0xb0] sm:$0xff] %v964
        %971 = vst [vmem:[#allocation3 + $0xb8] sm:$0xff] %v965
        %v972 = vld [vmem:[#allocation2] sm:$0xff]
        %v973 = vld [vmem:[#allocation2 + $0x8] sm:$0xff]
        %v974 = vld [vmem:[#allocation2 + $0x10] sm:$0xff]
        %v975 = vld [vmem:[#allocation2 + $0x18] sm:$0xff]
        %980 = vrot.lane.b32.xlu0 %v972, 90
        %v981 = vpop.permute.xlu0 %980
        %982 = vrot.lane.b32.xlu0 %v973, 90
        %v983 = vpop.permute.xlu0 %982
        %984 = vrot.lane.b32.xlu0 %v974, 90
        %v985 = vpop.permute.xlu0 %984
        %986 = vrot.lane.b32.xlu0 %v975, 90
        %v987 = vpop.permute.xlu0 %986
        %vm988 = vcmask 736256
        %v989 = vsel %vm988, %v981, %v983
        %v990 = vsel %vm988, %v983, %v985
        %v991 = vsel %vm988, %v985, %v987
        %995 = vst [vmem:[#allocation3 + $0xc0] sm:$0xff] %v989
        %996 = vst [vmem:[#allocation3 + $0xc8] sm:$0xff] %v990
        %997 = vst [vmem:[#allocation3 + $0xd0] sm:$0xff] %v991
        %v998 = vld [vmem:[%s2] sm:$0xff]
        %v999 = vld [vmem:[#allocation3] sm:$0xff]
        %v1000 = vld [vmem:[#allocation3 + $0x8] sm:$0xff]
        %v1001 = vld [vmem:[#allocation3 + $0x10] sm:$0xff]
        %v1002 = vld [vmem:[#allocation3 + $0x18] sm:$0xff]
        %v1003 = vld [vmem:[#allocation3 + $0x20] sm:$0xff]
        %v1004 = vld [vmem:[#allocation3 + $0x28] sm:$0xff]
        %v1005 = vld [vmem:[#allocation3 + $0x30] sm:$0xff]
        %v1006 = vld [vmem:[#allocation3 + $0x38] sm:$0xff]
        %v1007 = vld [vmem:[#allocation3 + $0x40] sm:$0xff]
        %v1008 = vld [vmem:[#allocation3 + $0x48] sm:$0xff]
        %v1009 = vld [vmem:[#allocation3 + $0x50] sm:$0xff]
        %v1010 = vld [vmem:[#allocation3 + $0x58] sm:$0xff]
        %v1011 = vld [vmem:[#allocation3 + $0x60] sm:$0xff]
        %v1012 = vld [vmem:[#allocation3 + $0x68] sm:$0xff]
        %v1013 = vld [vmem:[#allocation3 + $0x70] sm:$0xff]
        %v1014 = vld [vmem:[#allocation3 + $0x78] sm:$0xff]
        %v1015 = vld [vmem:[#allocation3 + $0x80] sm:$0xff]
        %v1016 = vld [vmem:[#allocation3 + $0x88] sm:$0xff]
        %v1017 = vld [vmem:[#allocation3 + $0x90] sm:$0xff]
        %v1018 = vld [vmem:[#allocation3 + $0x98] sm:$0xff]
        %v1019 = vld [vmem:[#allocation3 + $0xa0] sm:$0xff]
        %v1020 = vld [vmem:[#allocation3 + $0xa8] sm:$0xff]
        %v1021 = vld [vmem:[#allocation3 + $0xb0] sm:$0xff]
        %v1022 = vld [vmem:[#allocation3 + $0xb8] sm:$0xff]
        %v1023 = vld [vmem:[#allocation3 + $0xc0] sm:$0xff]
        %v1024 = vld [vmem:[#allocation3 + $0xc8] sm:$0xff]
        %v1025 = vld [vmem:[#allocation3 + $0xd0] sm:$0xff]
        %v1027 = vunpack.c.l.b16 %v998
        %v1028 = vunpack.c.h.b16 %v998
        %v1029 = vpack.c.b16 %v1027, %v1027
        %v1030 = vpack.c.b16 %v1028, %v1028
        %vm1032 = vcmask 130048
        %v1034 = vsel %vm1032, %v1030, 0
        %1036 = vmatprep.subr.bf16.mxu0 %v1000
        %1037 = vmatpush1.bf16.msra.mxu0 %v999
        %1038 = vmatprep.subr.bf16.mxu0 %v1003
        %1039 = vmatpush1.bf16.msra.mxu0 %v1002
        %1040 = vmatprep.subr.bf16.mxu0 %v1006
        %1041 = vmatpush1.bf16.msra.mxu0 %v1005
        %1042 = vmatprep.subr.bf16.mxu0 %v1009
        %1043 = vmatpush1.bf16.msra.mxu0 %v1008
        %1044 = vmatprep.subr.bf16.mxu0 %v1012
        %1045 = vmatpush1.bf16.msra.mxu0 %v1011
        %1046 = vmatprep.subr.bf16.mxu0 %v1015
        %1047 = vmatpush1.bf16.msra.mxu0 %v1014
        %1048 = vmatprep.subr.bf16.mxu0 %v1018
        %1049 = vmatpush1.bf16.msra.mxu0 %v1017
        %1050 = vmatprep.subr.bf16.mxu0 %v1021
        %1051 = vmatpush1.bf16.msra.mxu0 %v1020
        %1052 = vmatprep.subr.bf16.mxu0 %v1024
        %1053 = vmatpush1.bf16.msra.mxu0 %v1023
        %1054 = vmatprep.subr.bf16.mxu0 0
        %1055 = vmatpush1.bf16.msra.mxu0 0
        %1056 = vmatprep.subr.bf16.mxu0 0
        %1057 = vmatpush1.bf16.msra.mxu0 0
        %1058 = vmatprep.subr.bf16.mxu0 0
        %1059 = vmatpush1.bf16.msra.mxu0 0
        %1060 = vmatprep.subr.bf16.mxu0 0
        %1061 = vmatpush1.bf16.msra.mxu0 0
        %1062 = vmatprep.subr.bf16.mxu0 0
        %1063 = vmatpush1.bf16.msra.mxu0 0
        %1064 = vmatprep.subr.bf16.mxu0 0
        %1065 = vmatpush1.bf16.msra.mxu0 0
        %1066 = vmatprep.subr.bf16.mxu0 0
        %1067 = vmatpush1.bf16.msra.mxu0 0
        %1068 = vmatprep.mubr.bf16.mxu0 %v1034
        %1069 = vmatmul.mubr.bf16.gmra.mrb[0].mxu0 %v1029
        %v1070 = vpop.f32.mrb[0].mxu0
        %v1071 = vadd.f32 0.0, %v1070
        %v1072 = vpop.f32.mrb[0].mxu0
        %v1073 = vadd.f32 0.0, %v1072
        %v1074 = vpop.f32.mrb[0].mxu0
        %v1075 = vpop.f32.mrb[0].mxu0
        %1076 = vdwg.mxu0
        %1077 = vmatprep.subr.bf16.mxu0 0
        %1078 = vmatpush1.bf16.msra.mxu0 %v1001
        %1079 = vmatprep.subr.bf16.mxu0 0
        %1080 = vmatpush1.bf16.msra.mxu0 %v1004
        %1081 = vmatprep.subr.bf16.mxu0 0
        %1082 = vmatpush1.bf16.msra.mxu0 %v1007
        %1083 = vmatprep.subr.bf16.mxu0 0
        %1084 = vmatpush1.bf16.msra.mxu0 %v1010
        %1085 = vmatprep.subr.bf16.mxu0 0
        %1086 = vmatpush1.bf16.msra.mxu0 %v1013
        %1087 = vmatprep.subr.bf16.mxu0 0
        %1088 = vmatpush1.bf16.msra.mxu0 %v1016
        %1089 = vmatprep.subr.bf16.mxu0 0
        %1090 = vmatpush1.bf16.msra.mxu0 %v1019
        %1091 = vmatprep.subr.bf16.mxu0 0
        %1092 = vmatpush1.bf16.msra.mxu0 %v1022
        %1093 = vmatprep.subr.bf16.mxu0 0
        %1094 = vmatpush1.bf16.msra.mxu0 %v1025
        %1095 = vmatprep.subr.bf16.mxu0 0
        %1096 = vmatpush1.bf16.msra.mxu0 0
        %1097 = vmatprep.subr.bf16.mxu0 0
        %1098 = vmatpush1.bf16.msra.mxu0 0
        %1099 = vmatprep.subr.bf16.mxu0 0
        %1100 = vmatpush1.bf16.msra.mxu0 0
        %1101 = vmatprep.subr.bf16.mxu0 0
        %1102 = vmatpush1.bf16.msra.mxu0 0
        %1103 = vmatprep.subr.bf16.mxu0 0
        %1104 = vmatpush1.bf16.msra.mxu0 0
        %1105 = vmatprep.subr.bf16.mxu0 0
        %1106 = vmatpush1.bf16.msra.mxu0 0
        %1107 = vmatprep.subr.bf16.mxu0 0
        %1108 = vmatpush1.bf16.msra.mxu0 0
        %1109 = vmatprep.mubr.bf16.mxu0 %v1034
        %1110 = vmatmul.mubr.bf16.gmra.mrb[0].mxu0 %v1029
        %v1111 = vpop.f32.mrb[0].mxu0
        %v1112 = vadd.f32 0.0, %v1111
        %v1113 = vpop.f32.mrb[0].mxu0
        %v1114 = vpop.f32.mrb[0].mxu0
        %v1115 = vpop.f32.mrb[0].mxu0
        %1116 = vdwg.mxu0
        %v1117 = vld [vmem:[%s3] sm:$0xff]
        %1119 = vset.pattern.permute.xlu0 0
        %1120 = vperm.xlu0 %1119, %v1117
        %v1121 = vpop.permute.xlu0 %1120
        %v1123 = vmul.f32 %v1071, %v1121
        %v1124 = vmul.f32 %v1073, %v1121
        %v1125 = vmul.f32 %v1112, %v1121
        %v1126 = vld [vmem:[%s4] sm:$0xff]
        %1128 = vset.pattern.permute.xlu0 0
        %1129 = vperm.xlu0 %1128, %v1126
        %v1130 = vpop.permute.xlu0 %1129
        %v1132 = vadd.f32 %v1123, %v1130
        %v1133 = vadd.f32 %v1124, %v1130
        %v1134 = vadd.f32 %v1125, %v1130
        %v1135 = vmin.f32 %v1132, 20.0
        %v1136 = vmin.f32 %v1133, 20.0
        %v1137 = vmin.f32 %v1134, 20.0
        %v1138 = vmul.f32 %v1135, 1.442695
        %v1139 = vpow.pop %v1138
        %v1140 = vmul.f32 %v1136, 1.442695
        %v1141 = vpow.pop %v1140
        %v1142 = vmul.f32 %v1137, 1.442695
        %v1143 = vpow.pop %v1142
        %v1144 = vadd.f32 %v1139, 2.0
        %v1145 = vadd.f32 %v1141, 2.0
        %v1146 = vadd.f32 %v1143, 2.0
        %v1147 = vmul.f32 %v1139, %v1144
        %v1148 = vmul.f32 %v1141, %v1145
        %v1149 = vmul.f32 %v1143, %v1146
        %v1150 = vadd.f32 %v1147, 2.0
        %v1151 = vadd.f32 %v1148, 2.0
        %v1152 = vadd.f32 %v1149, 2.0
        %v1153 = vrcp.pop %v1150
        %v1154 = vrcp.pop %v1151
        %v1155 = vrcp.pop %v1152
        %v1156 = vmul.f32 %v1147, %v1153
        %v1157 = vmul.f32 %v1148, %v1154
        %v1158 = vmul.f32 %v1149, %v1155
        %vm1159 = vcmp.gt.f32.partialorder %v1132, 20.0
        %vm1160 = vcmp.gt.f32.partialorder %v1133, 20.0
        %vm1161 = vcmp.gt.f32.partialorder %v1134, 20.0
        %v1162 = vsel %vm1159, 1.0, %v1156
        %v1163 = vsel %vm1160, 1.0, %v1157
        %v1164 = vsel %vm1161, 1.0, %v1158
        %v1165 = vmul.f32 %v1132, %v1162
        %v1166 = vmul.f32 %v1133, %v1163
        %v1167 = vmul.f32 %v1134, %v1164
        %1168 = vst [vmem:[%s749] sm:$0xff] %v1165
        %1169 = vst [vmem:[%s749 + $0x8] sm:$0xff] %v1166
        %1170 = vst [vmem:[%s749 + $0x10] sm:$0xff] %v1167
        %s1171 = smul.u32 3, %s21
        %p1172 = scmp.lt.s32.totalorder %s20, 1
        %s1173 = scalar_select %p1172, %s20, 1
        %p1174 = scmp.lt.s32.totalorder %s1171, 2
        %s1175 = scalar_select %p1174, %s1171, 2
        %s1176 = smul.addr %s1173, 3
        %s1177 = sadd.s32 %s1175, %s1176
        %s1178 = smul.addr %s1177, 8
        %s1179 = scalar_lea.vmem %s5, %s1178
        // Predicated region
        $region148: #{basic_conv_forward.1} parent=138 // pred_check
          %p1180 = pneg %p171
        $region149: #{basic_conv_forward.1} parent=138 // pred_check_branch
          %1182 = sbr.rel (%p1180) target = $region151
        $region150: #{basic_conv_forward.1} parent=138 // pred_region
          %s1183 = smul.u32 3, %s21
        $region151: #{basic_conv_forward.1} parent=138 // pred_fallthru
          _
      $region139: #{basic_conv_forward.1} parent=5 // pred_fallthru
        _
      %p1184 = scmp.le.s32.totalorder 2, %s11
      // Predicated region
      $region152: #{basic_conv_forward.1} parent=5 // pred_check
        %p1185 = pneg %p1184
      $region153: #{basic_conv_forward.1} parent=5 // pred_check_branch
        %1187 = sbr.rel (%p1185) target = $region155
      $region154: #{basic_conv_forward.1} parent=5 // pred_region
        %s1188 = ssub.s32 %s11, 2
        // Predicated region
        $region156: #{basic_conv_forward.1} parent=154 // pred_check
          %p1189 = pneg %p177
        $region157: #{basic_conv_forward.1} parent=154 // pred_check_branch
          %1191 = sbr.rel (%p1189) target = $region159
        $region158: #{basic_conv_forward.1} parent=154 // pred_region
          %s1192 = smul.u32 3, %s23
          %p1193 = scmp.lt.s32.totalorder %s22, 1
          %s1194 = scalar_select %p1193, %s22, 1
          %p1195 = scmp.lt.s32.totalorder %s1192, 2
          %s1196 = scalar_select %p1195, %s1192, 2
          %s1197 = smul.addr %s1194, 3
          %s1198 = sadd.s32 %s1196, %s1197
          %s1199 = smul.addr %s1198, 8
          %s1200 = scalar_lea.vmem %s5, %s1199
        $region159: #{basic_conv_forward.1} parent=154 // pred_fallthru
          _
      $region155: #{basic_conv_forward.1} parent=5 // pred_fallthru
        _
    $region6: #{basic_conv_forward.1} parent=1 // loop_footer
      %s15 = sadd.s32 1, %s11
    $region7: #{basic_conv_forward.1} parent=1 // loop_footer_branch
      %10 = sbr.rel target = $region3
    $region8: #{basic_conv_forward.1} parent=1 // loop_exit
      _

</llo_original>
